<compile_context>
chip_gen: v7x
topology: tpu7x:2x2x1
jax: 0.10.0
libtpu: 0.0.40
codegen_flags: <defaults>
</compile_context>

<pallas_src>
import math

import jax
import jax.numpy as jnp
from jax.experimental import pallas as pl
from jax.experimental.pallas import tpu as pltpu

RAT_PAD = 128  # lane-dense padding for the rationale head output


def _make_kernel(compute_dtype):
    cd = compute_dtype

    def kernel(rp_ref, sp_ref,
               wq_ref, bq_ref, wkv_ref, bkv_ref, wo_ref, bo_ref, wr_ref, br_ref,
               cls_ref, rat_ref):
        bb, s, h = rp_ref.shape
        rp = rp_ref[...].reshape(bb * s, h)   # fold batch block into matmul M
        sp = sp_ref[...].reshape(bb * s, h)

        # Q projection (scale pre-folded into wq/bq) + fused K|V projection.
        q = jnp.dot(rp.astype(cd), wq_ref[...].astype(cd),
                    preferred_element_type=jnp.float32) + bq_ref[...]
        kv = jnp.dot(sp.astype(cd), wkv_ref[...].astype(cd),
                     preferred_element_type=jnp.float32) + bkv_ref[...]
        q = q.reshape(bb, s, h)
        k = kv[:, :h].reshape(bb, s, h)
        v = kv[:, h:].reshape(bb, s, h)

        # scores: contract last axes directly (no explicit k.T transpose).
        scores = jnp.einsum("bqh,bkh->bqk", q.astype(cd), k.astype(cd),
                            preferred_element_type=jnp.float32)
        m = jnp.max(scores, axis=-1, keepdims=True)
        p = jnp.exp(scores - m)
        attn = p * pl.reciprocal(jnp.sum(p, axis=-1, keepdims=True), approx=True)

        ctx = jnp.einsum("bqk,bkh->bqh", attn.astype(cd), v.astype(cd),
                         preferred_element_type=jnp.float32)
        attn_out = jnp.dot(ctx.reshape(bb * s, h).astype(cd),
                           wo_ref[...].astype(cd),
                           preferred_element_type=jnp.float32) + bo_ref[...]

        # residual add (dropout == identity in eval mode)
        rp2 = rp + attn_out

        # rationale classifier on every token, lane-padded output columns
        rat = jnp.dot(rp2.astype(cd), wr_ref[...].astype(cd),
                      preferred_element_type=jnp.float32) + br_ref[...]
        rat_ref[...] = rat.reshape(bb, s, -1)

        # export CLS rows for the (batched, outside-kernel) empathy head
        cls_ref[0] = rp2.reshape(bb, s, h)[:, 0, :]

    return kernel


def _pick_block_batch(B):
    """Largest BB dividing B that still leaves >=2 grid steps (2 TCs on v7x)."""
    for bb in (8, 4, 2, 1):
        if bb <= B and B % bb == 0 and (B // bb >= 2 or B == bb == 1):
            return bb
    return 1


def prepare_params(params, rat_pad=RAT_PAD):
    """One-time (static) parameter packing: scale folding, K|V fusion, padding."""
    H = params["wq"].shape[0]
    scale = 1.0 / math.sqrt(float(H))  # attn_heads == 1 -> d_k == hidden_size
    n_rat = params["wr"].shape[1]
    return {
        "wq": params["wq"] * scale,
        "bq": params["bq"] * scale,
        "wkv": jnp.concatenate([params["wk"], params["wv"]], axis=1),
        "bkv": jnp.concatenate([params["bk"], params["bv"]], axis=1),
        "wo": params["wo"], "bo": params["bo"],
        "wr": jnp.pad(params["wr"], ((0, 0), (0, rat_pad - n_rat))),
        "br": jnp.pad(params["br"], ((0, 0), (0, rat_pad - n_rat))),
        # empathy head runs outside the kernel, batched over B
        "wd": params["wd"], "bd": params["bd"],
        "we": params["we"], "be": params["be"],
        "rat_labels": int(n_rat),
    }


def biencoder_forward(seq_rp, seq_sp, packed, *, compute_dtype=jnp.float32):
    """seq_rp, seq_sp: [B, S, H] float32 encoder outputs; packed = prepare_params(...)."""
    B, S, H = seq_rp.shape
    RPAD = packed["wr"].shape[1]
    bb = _pick_block_batch(B)
    grid = (B // bb,)

    kernel = _make_kernel(compute_dtype)
    weight_args = (packed["wq"], packed["bq"], packed["wkv"], packed["bkv"],
                   packed["wo"], packed["bo"], packed["wr"], packed["br"])

    # explicit scoped-VMEM budget (v5e default is only 16 MiB; v7x physical is 64 MiB)
    f32 = 4
    w_bytes = sum(int(a.size) for a in weight_args) * f32
    act_bytes = (2 * bb * S * H + bb * H + bb * S * RPAD) * f32 * 2
    tmp_bytes = bb * S * (8 * H + 2 * S + RPAD) * f32
    est = 2 * w_bytes + act_bytes + tmp_bytes
    vmem_limit = int(min(64 * 2**20, max(2 * est, 16 * 2**20)))

    def build(single_buffer_weights):
        def wspec(arr):
            shape = arr.shape
            kw = {}
            if single_buffer_weights:
                # weights never change across the grid -> single buffer
                kw["pipeline_mode"] = pl.Buffered(1)
            return pl.BlockSpec(shape, lambda b: (0,) * len(shape), **kw)

        in_specs = [
            pl.BlockSpec((bb, S, H), lambda b: (b, 0, 0)),   # seq_rp block
            pl.BlockSpec((bb, S, H), lambda b: (b, 0, 0)),   # seq_sp block
        ] + [wspec(a) for a in weight_args]
        out_specs = (
            pl.BlockSpec((1, bb, H), lambda b: (b, 0, 0)),        # CLS rows
            pl.BlockSpec((bb, S, RPAD), lambda b: (b, 0, 0)),     # rationale (padded)
        )
        out_shape = (
            jax.ShapeDtypeStruct((B // bb, bb, H), jnp.float32),
            jax.ShapeDtypeStruct((B, S, RPAD), jnp.float32),
        )
        return pl.pallas_call(
            kernel,
            out_shape=out_shape,
            grid_spec=pltpu.PrefetchScalarGridSpec(
                num_scalar_prefetch=0, grid=grid,
                in_specs=in_specs, out_specs=out_specs),
            compiler_params=pltpu.CompilerParams(
                dimension_semantics=("parallel",),
                vmem_limit_bytes=vmem_limit),
        )

    args = (seq_rp, seq_sp) + weight_args
    try:
        cls_blk, rat_pad_out = build(True)(*args)
    except Exception:
        # pipeline_mode=pl.Buffered(1) not supported on this jax/libtpu:
        # fall back to default double-buffered weight specs.
        cls_blk, rat_pad_out = build(False)(*args)

    # empathy head (BertClassificationHead): CLS -> dense -> tanh -> out, batched over B
    cls_rows = cls_blk.reshape(B, H)
    h = jnp.tanh(cls_rows @ packed["wd"] + packed["bd"])
    logits_emp = h @ packed["we"] + packed["be"]
    logits_rat = rat_pad_out[..., :packed["rat_labels"]]
    return logits_emp, logits_rat


def biencoder_reference(seq_rp, seq_sp, params):
    """Plain-JAX reference mirroring the PyTorch forward (eval mode, no labels)."""
    H = seq_rp.shape[-1]
    q = seq_rp @ params["wq"] + params["bq"]
    k = seq_sp @ params["wk"] + params["bk"]
    v = seq_sp @ params["wv"] + params["bv"]
    scores = jnp.einsum("bqh,bkh->bqk", q, k) / math.sqrt(H)
    attn = jax.nn.softmax(scores, axis=-1)
    ctx = jnp.einsum("bqk,bkh->bqh", attn, v)
    attn_out = ctx @ params["wo"] + params["bo"]
    rp2 = seq_rp + attn_out
    cls = rp2[:, 0, :]
    h = jnp.tanh(cls @ params["wd"] + params["bd"])
    logits_emp = h @ params["we"] + params["be"]
    logits_rat = rp2 @ params["wr"] + params["br"]
    return logits_emp, logits_rat


def init_params(key, hidden, emp_labels=3, rat_labels=2, std=0.02):
    ks = jax.random.split(key, 7)
    p = {}
    names = ["wq", "wk", "wv", "wo", "wd"]
    for i, n in enumerate(names):
        p[n] = std * jax.random.normal(ks[i], (hidden, hidden), jnp.float32)
        p["b" + n[1]] = jnp.zeros((1, hidden), jnp.float32)
    p["we"] = std * jax.random.normal(ks[5], (hidden, emp_labels), jnp.float32)
    p["be"] = jnp.zeros((1, emp_labels), jnp.float32)
    p["wr"] = std * jax.random.normal(ks[6], (hidden, rat_labels), jnp.float32)
    p["br"] = jnp.zeros((1, rat_labels), jnp.float32)
    return p


if __name__ == "__main__":
    # small shapes: batch, seq, hidden (module default hidden=768); B=4 exercises
    # batch-blocking (BB=2) while keeping >=2 parallel grid steps.
    B, S, H = 4, 8, 32

    key = jax.random.PRNGKey(0)
    k_rp, k_sp, k_par = jax.random.split(key, 3)
    seq_rp = jax.random.normal(k_rp, (B, S, H), jnp.float32)  # responder encoder output
    seq_sp = jax.random.normal(k_sp, (B, S, H), jnp.float32)  # seeker encoder output
    params = init_params(k_par, H)
    packed = prepare_params(params)

    logits_emp, logits_rat = biencoder_forward(seq_rp, seq_sp, packed)
    jax.block_until_ready((logits_emp, logits_rat))

    ref_emp, ref_rat = biencoder_reference(seq_rp, seq_sp, params)
    assert logits_emp.shape == (B, 3) and logits_rat.shape == (B, S, 2)
    assert jnp.allclose(logits_emp, ref_emp, atol=1e-3, rtol=1e-3)
    assert jnp.allclose(logits_rat, ref_rat, atol=1e-3, rtol=1e-3)

    print("KERNEL_OK")
</pallas_src>

<mosaic_0001>
module attributes {stable_mosaic.version = 11 : i64} {
  func.func @kernel(%arg0: i32, %arg1: memref<2x8x32xf32, #tpu.memory_space<vmem>>, %arg2: memref<2x8x32xf32, #tpu.memory_space<vmem>>, %arg3: memref<32x32xf32, #tpu.memory_space<vmem>>, %arg4: memref<1x32xf32, #tpu.memory_space<vmem>>, %arg5: memref<32x64xf32, #tpu.memory_space<vmem>>, %arg6: memref<1x64xf32, #tpu.memory_space<vmem>>, %arg7: memref<32x32xf32, #tpu.memory_space<vmem>>, %arg8: memref<1x32xf32, #tpu.memory_space<vmem>>, %arg9: memref<32x128xf32, #tpu.memory_space<vmem>>, %arg10: memref<1x128xf32, #tpu.memory_space<vmem>>, %arg11: memref<1x2x32xf32, #tpu.memory_space<vmem>>, %arg12: memref<2x8x128xf32, #tpu.memory_space<vmem>>) attributes {dimension_semantics = [#tpu.dimension_semantics<parallel>], iteration_bounds = array<i64: 2>, scalar_prefetch = 0 : i64, scratch_operands = 0 : i64, tpu.core_type = #tpu.core_type<tc>, window_params = [{transform_indices = @transform_0, window_bounds = array<i64: 2, 8, 32>}, {transform_indices = @transform_1, window_bounds = array<i64: 2, 8, 32>}, {pipeline_mode = #tpu.pipeline_mode<synchronous>, transform_indices = @transform_2, window_bounds = array<i64: 32, 32>}, {pipeline_mode = #tpu.pipeline_mode<synchronous>, transform_indices = @transform_3, window_bounds = array<i64: 1, 32>}, {pipeline_mode = #tpu.pipeline_mode<synchronous>, transform_indices = @transform_4, window_bounds = array<i64: 32, 64>}, {pipeline_mode = #tpu.pipeline_mode<synchronous>, transform_indices = @transform_5, window_bounds = array<i64: 1, 64>}, {pipeline_mode = #tpu.pipeline_mode<synchronous>, transform_indices = @transform_6, window_bounds = array<i64: 32, 32>}, {pipeline_mode = #tpu.pipeline_mode<synchronous>, transform_indices = @transform_7, window_bounds = array<i64: 1, 32>}, {pipeline_mode = #tpu.pipeline_mode<synchronous>, transform_indices = @transform_8, window_bounds = array<i64: 32, 128>}, {pipeline_mode = #tpu.pipeline_mode<synchronous>, transform_indices = @transform_9, window_bounds = array<i64: 1, 128>}, {transform_indices = @transform_10, window_bounds = array<i64: 1, 2, 32>}, {transform_indices = @transform_11, window_bounds = array<i64: 2, 8, 128>}]} {
    %c0 = arith.constant 0 : index
    %c0_0 = arith.constant 0 : index
    %c0_1 = arith.constant 0 : index
    %0 = vector.load %arg1[%c0, %c0_0, %c0_1] : memref<2x8x32xf32, #tpu.memory_space<vmem>>, vector<2x8x32xf32>
    %1 = vector.shape_cast %0 : vector<2x8x32xf32> to vector<16x32xf32>
    %c0_2 = arith.constant 0 : index
    %c0_3 = arith.constant 0 : index
    %c0_4 = arith.constant 0 : index
    %2 = vector.load %arg2[%c0_2, %c0_3, %c0_4] : memref<2x8x32xf32, #tpu.memory_space<vmem>>, vector<2x8x32xf32>
    %3 = vector.shape_cast %2 : vector<2x8x32xf32> to vector<16x32xf32>
    %c0_5 = arith.constant 0 : index
    %c0_6 = arith.constant 0 : index
    %4 = vector.load %arg3[%c0_5, %c0_6] : memref<32x32xf32, #tpu.memory_space<vmem>>, vector<32x32xf32>
    %cst = arith.constant dense<0.000000e+00> : vector<16x32xf32>
    %5 = tpu.matmul %1, %4, %cst {dimension_numbers = #tpu.dot_dimension_numbers<[1], [0], [0], [1], [0, 0, 1, 1], [], []>} : vector<16x32xf32>, vector<32x32xf32>, vector<16x32xf32> -> vector<16x32xf32>
    %c0_7 = arith.constant 0 : index
    %c0_8 = arith.constant 0 : index
    %6 = vector.load %arg4[%c0_7, %c0_8] : memref<1x32xf32, #tpu.memory_space<vmem>>, vector<1x32xf32>
    %7 = vector.broadcast %6 : vector<1x32xf32> to vector<16x32xf32>
    %8 = arith.addf %5, %7 : vector<16x32xf32>
    %c0_9 = arith.constant 0 : index
    %c0_10 = arith.constant 0 : index
    %9 = vector.load %arg5[%c0_9, %c0_10] : memref<32x64xf32, #tpu.memory_space<vmem>>, vector<32x64xf32>
    %cst_11 = arith.constant dense<0.000000e+00> : vector<16x64xf32>
    %10 = tpu.matmul %3, %9, %cst_11 {dimension_numbers = #tpu.dot_dimension_numbers<[1], [0], [0], [1], [0, 0, 1, 1], [], []>} : vector<16x32xf32>, vector<32x64xf32>, vector<16x64xf32> -> vector<16x64xf32>
    %c0_12 = arith.constant 0 : index
    %c0_13 = arith.constant 0 : index
    %11 = vector.load %arg6[%c0_12, %c0_13] : memref<1x64xf32, #tpu.memory_space<vmem>>, vector<1x64xf32>
    %12 = vector.broadcast %11 : vector<1x64xf32> to vector<16x64xf32>
    %13 = arith.addf %10, %12 : vector<16x64xf32>
    %14 = vector.shape_cast %8 : vector<16x32xf32> to vector<2x8x32xf32>
    %15 = vector.extract_strided_slice %13 {offsets = [0, 0], sizes = [16, 32], strides = [1, 1]} : vector<16x64xf32> to vector<16x32xf32>
    %16 = vector.shape_cast %15 : vector<16x32xf32> to vector<2x8x32xf32>
    %17 = vector.extract_strided_slice %13 {offsets = [0, 32], sizes = [16, 32], strides = [1, 1]} : vector<16x64xf32> to vector<16x32xf32>
    %18 = vector.shape_cast %17 : vector<16x32xf32> to vector<2x8x32xf32>
    "tpu.trace_start"() <{level = 10 : i32, message = "bqh,bkh->bqk"}> : () -> ()
    %cst_14 = arith.constant dense<0.000000e+00> : vector<2x8x8xf32>
    %19 = tpu.matmul %14, %16, %cst_14 {dimension_numbers = #tpu.dot_dimension_numbers<[2], [2], [1], [1], [0, 0, 0, 1, 1, 1], [0], [0]>} : vector<2x8x32xf32>, vector<2x8x32xf32>, vector<2x8x8xf32> -> vector<2x8x8xf32>
    "tpu.trace_stop"() : () -> ()
    %cst_15 = arith.constant dense<0xFF800000> : vector<2x8xf32>
    %20 = vector.multi_reduction <maximumf>, %19, %cst_15 [2] : vector<2x8x8xf32> to vector<2x8xf32>
    %21 = vector.shape_cast %20 : vector<2x8xf32> to vector<2x8x1xf32>
    %22 = vector.broadcast %21 : vector<2x8x1xf32> to vector<2x8x8xf32>
    %23 = arith.subf %19, %22 : vector<2x8x8xf32>
    %24 = math.exp %23 : vector<2x8x8xf32>
    %cst_16 = arith.constant dense<0.000000e+00> : vector<2x8xf32>
    %25 = vector.multi_reduction <add>, %24, %cst_16 [2] : vector<2x8x8xf32> to vector<2x8xf32>
    %26 = vector.shape_cast %25 : vector<2x8xf32> to vector<2x8x1xf32>
    %27 = tpu.reciprocal %26 {approx = true} : vector<2x8x1xf32> -> vector<2x8x1xf32>
    %28 = vector.broadcast %27 : vector<2x8x1xf32> to vector<2x8x8xf32>
    %29 = arith.mulf %24, %28 : vector<2x8x8xf32>
    "tpu.trace_start"() <{level = 10 : i32, message = "bqk,bkh->bqh"}> : () -> ()
    %cst_17 = arith.constant dense<0.000000e+00> : vector<2x8x32xf32>
    %30 = tpu.matmul %29, %18, %cst_17 {dimension_numbers = #tpu.dot_dimension_numbers<[2], [1], [1], [2], [0, 0, 0, 1, 1, 2], [0], [0]>} : vector<2x8x8xf32>, vector<2x8x32xf32>, vector<2x8x32xf32> -> vector<2x8x32xf32>
    "tpu.trace_stop"() : () -> ()
    %31 = vector.shape_cast %30 : vector<2x8x32xf32> to vector<16x32xf32>
    %c0_18 = arith.constant 0 : index
    %c0_19 = arith.constant 0 : index
    %32 = vector.load %arg7[%c0_18, %c0_19] : memref<32x32xf32, #tpu.memory_space<vmem>>, vector<32x32xf32>
    %cst_20 = arith.constant dense<0.000000e+00> : vector<16x32xf32>
    %33 = tpu.matmul %31, %32, %cst_20 {dimension_numbers = #tpu.dot_dimension_numbers<[1], [0], [0], [1], [0, 0, 1, 1], [], []>} : vector<16x32xf32>, vector<32x32xf32>, vector<16x32xf32> -> vector<16x32xf32>
    %c0_21 = arith.constant 0 : index
    %c0_22 = arith.constant 0 : index
    %34 = vector.load %arg8[%c0_21, %c0_22] : memref<1x32xf32, #tpu.memory_space<vmem>>, vector<1x32xf32>
    %35 = vector.broadcast %34 : vector<1x32xf32> to vector<16x32xf32>
    %36 = arith.addf %33, %35 : vector<16x32xf32>
    %37 = arith.addf %1, %36 : vector<16x32xf32>
    %c0_23 = arith.constant 0 : index
    %c0_24 = arith.constant 0 : index
    %38 = vector.load %arg9[%c0_23, %c0_24] : memref<32x128xf32, #tpu.memory_space<vmem>>, vector<32x128xf32>
    %cst_25 = arith.constant dense<0.000000e+00> : vector<16x128xf32>
    %39 = tpu.matmul %37, %38, %cst_25 {dimension_numbers = #tpu.dot_dimension_numbers<[1], [0], [0], [1], [0, 0, 1, 1], [], []>} : vector<16x32xf32>, vector<32x128xf32>, vector<16x128xf32> -> vector<16x128xf32>
    %c0_26 = arith.constant 0 : index
    %c0_27 = arith.constant 0 : index
    %40 = vector.load %arg10[%c0_26, %c0_27] : memref<1x128xf32, #tpu.memory_space<vmem>>, vector<1x128xf32>
    %41 = vector.broadcast %40 : vector<1x128xf32> to vector<16x128xf32>
    %42 = arith.addf %39, %41 : vector<16x128xf32>
    %43 = vector.shape_cast %42 : vector<16x128xf32> to vector<2x8x128xf32>
    %c0_28 = arith.constant 0 : index
    %c0_29 = arith.constant 0 : index
    %c0_30 = arith.constant 0 : index
    %44 = vector.load %arg12[%c0_28, %c0_29, %c0_30] : memref<2x8x128xf32, #tpu.memory_space<vmem>>, vector<2x8x128xf32>
    tpu.vector_store %arg12[%c0_28, %c0_29, %c0_30], %43 {strides = array<i32>} : memref<2x8x128xf32, #tpu.memory_space<vmem>>, vector<2x8x128xf32>,
    %45 = vector.shape_cast %37 : vector<16x32xf32> to vector<2x8x32xf32>
    %46 = vector.extract_strided_slice %45 {offsets = [0, 0, 0], sizes = [2, 1, 32], strides = [1, 1, 1]} : vector<2x8x32xf32> to vector<2x1x32xf32>
    %47 = vector.shape_cast %46 : vector<2x1x32xf32> to vector<2x32xf32>
    %c0_31 = arith.constant 0 : index
    %c0_32 = arith.constant 0 : index
    %c0_33 = arith.constant 0 : index
    %48 = vector.load %arg11[%c0_31, %c0_32, %c0_33] : memref<1x2x32xf32, #tpu.memory_space<vmem>>, vector<1x2x32xf32>
    %49 = vector.shape_cast %48 : vector<1x2x32xf32> to vector<2x32xf32>
    %50 = vector.shape_cast %47 : vector<2x32xf32> to vector<1x2x32xf32>
    tpu.vector_store %arg11[%c0_31, %c0_32, %c0_33], %50 {strides = array<i32>} : memref<1x2x32xf32, #tpu.memory_space<vmem>>, vector<1x2x32xf32>,
    return
  }
  func.func @transform_0(%arg0: i32) -> (i32, i32, i32) {
    %c0_i32 = arith.constant 0 : i32
    %c0_i32_0 = arith.constant 0 : i32
    %c0_i32_1 = arith.constant 0 : i32
    return %arg0, %c0_i32, %c0_i32_0 : i32, i32, i32
  }
  func.func @transform_1(%arg0: i32) -> (i32, i32, i32) {
    %c0_i32 = arith.constant 0 : i32
    %c0_i32_0 = arith.constant 0 : i32
    %c0_i32_1 = arith.constant 0 : i32
    return %arg0, %c0_i32, %c0_i32_0 : i32, i32, i32
  }
  func.func @transform_2(%arg0: i32) -> (i32, i32) {
    %c0_i32 = arith.constant 0 : i32
    %c0_i32_0 = arith.constant 0 : i32
    %c0_i32_1 = arith.constant 0 : i32
    return %c0_i32, %c0_i32_0 : i32, i32
  }
  func.func @transform_3(%arg0: i32) -> (i32, i32) {
    %c0_i32 = arith.constant 0 : i32
    %c0_i32_0 = arith.constant 0 : i32
    %c0_i32_1 = arith.constant 0 : i32
    return %c0_i32, %c0_i32_0 : i32, i32
  }
  func.func @transform_4(%arg0: i32) -> (i32, i32) {
    %c0_i32 = arith.constant 0 : i32
    %c0_i32_0 = arith.constant 0 : i32
    %c0_i32_1 = arith.constant 0 : i32
    return %c0_i32, %c0_i32_0 : i32, i32
  }
  func.func @transform_5(%arg0: i32) -> (i32, i32) {
    %c0_i32 = arith.constant 0 : i32
    %c0_i32_0 = arith.constant 0 : i32
    %c0_i32_1 = arith.constant 0 : i32
    return %c0_i32, %c0_i32_0 : i32, i32
  }
  func.func @transform_6(%arg0: i32) -> (i32, i32) {
    %c0_i32 = arith.constant 0 : i32
    %c0_i32_0 = arith.constant 0 : i32
    %c0_i32_1 = arith.constant 0 : i32
    return %c0_i32, %c0_i32_0 : i32, i32
  }
  func.func @transform_7(%arg0: i32) -> (i32, i32) {
    %c0_i32 = arith.constant 0 : i32
    %c0_i32_0 = arith.constant 0 : i32
    %c0_i32_1 = arith.constant 0 : i32
    return %c0_i32, %c0_i32_0 : i32, i32
  }
  func.func @transform_8(%arg0: i32) -> (i32, i32) {
    %c0_i32 = arith.constant 0 : i32
    %c0_i32_0 = arith.constant 0 : i32
    %c0_i32_1 = arith.constant 0 : i32
    return %c0_i32, %c0_i32_0 : i32, i32
  }
  func.func @transform_9(%arg0: i32) -> (i32, i32) {
    %c0_i32 = arith.constant 0 : i32
    %c0_i32_0 = arith.constant 0 : i32
    %c0_i32_1 = arith.constant 0 : i32
    return %c0_i32, %c0_i32_0 : i32, i32
  }
  func.func @transform_10(%arg0: i32) -> (i32, i32, i32) {
    %c0_i32 = arith.constant 0 : i32
    %c0_i32_0 = arith.constant 0 : i32
    %c0_i32_1 = arith.constant 0 : i32
    return %arg0, %c0_i32, %c0_i32_0 : i32, i32, i32
  }
  func.func @transform_11(%arg0: i32) -> (i32, i32, i32) {
    %c0_i32 = arith.constant 0 : i32
    %c0_i32_0 = arith.constant 0 : i32
    %c0_i32_1 = arith.constant 0 : i32
    return %arg0, %c0_i32, %c0_i32_0 : i32, i32, i32
  }
}

module attributes {stable_mosaic.version = 11 : i64} {
  func.func @kernel(%arg0: i32, %arg1: memref<2x8x32xf32, #tpu.memory_space<vmem>>, %arg2: memref<2x8x32xf32, #tpu.memory_space<vmem>>, %arg3: memref<32x32xf32, #tpu.memory_space<vmem>>, %arg4: memref<1x32xf32, #tpu.memory_space<vmem>>, %arg5: memref<32x64xf32, #tpu.memory_space<vmem>>, %arg6: memref<1x64xf32, #tpu.memory_space<vmem>>, %arg7: memref<32x32xf32, #tpu.memory_space<vmem>>, %arg8: memref<1x32xf32, #tpu.memory_space<vmem>>, %arg9: memref<32x128xf32, #tpu.memory_space<vmem>>, %arg10: memref<1x128xf32, #tpu.memory_space<vmem>>, %arg11: memref<1x2x32xf32, #tpu.memory_space<vmem>>, %arg12: memref<2x8x128xf32, #tpu.memory_space<vmem>>) attributes {dimension_semantics = [#tpu.dimension_semantics<parallel>], iteration_bounds = array<i64: 2>, scalar_prefetch = 0 : i64, scratch_operands = 0 : i64, tpu.core_type = #tpu.core_type<tc>, window_params = [{transform_indices = @transform_0, window_bounds = array<i64: 2, 8, 32>}, {transform_indices = @transform_1, window_bounds = array<i64: 2, 8, 32>}, {pipeline_mode = #tpu.pipeline_mode<synchronous>, transform_indices = @transform_2, window_bounds = array<i64: 32, 32>}, {pipeline_mode = #tpu.pipeline_mode<synchronous>, transform_indices = @transform_3, window_bounds = array<i64: 1, 32>}, {pipeline_mode = #tpu.pipeline_mode<synchronous>, transform_indices = @transform_4, window_bounds = array<i64: 32, 64>}, {pipeline_mode = #tpu.pipeline_mode<synchronous>, transform_indices = @transform_5, window_bounds = array<i64: 1, 64>}, {pipeline_mode = #tpu.pipeline_mode<synchronous>, transform_indices = @transform_6, window_bounds = array<i64: 32, 32>}, {pipeline_mode = #tpu.pipeline_mode<synchronous>, transform_indices = @transform_7, window_bounds = array<i64: 1, 32>}, {pipeline_mode = #tpu.pipeline_mode<synchronous>, transform_indices = @transform_8, window_bounds = array<i64: 32, 128>}, {pipeline_mode = #tpu.pipeline_mode<synchronous>, transform_indices = @transform_9, window_bounds = array<i64: 1, 128>}, {transform_indices = @transform_10, window_bounds = array<i64: 1, 2, 32>}, {transform_indices = @transform_11, window_bounds = array<i64: 2, 8, 128>}]} {
    %c0 = arith.constant 0 : index
    %c0_0 = arith.constant 0 : index
    %c0_1 = arith.constant 0 : index
    %0 = vector.load %arg1[%c0, %c0_0, %c0_1] : memref<2x8x32xf32, #tpu.memory_space<vmem>>, vector<2x8x32xf32>
    %1 = vector.shape_cast %0 : vector<2x8x32xf32> to vector<16x32xf32>
    %c0_2 = arith.constant 0 : index
    %c0_3 = arith.constant 0 : index
    %c0_4 = arith.constant 0 : index
    %2 = vector.load %arg2[%c0_2, %c0_3, %c0_4] : memref<2x8x32xf32, #tpu.memory_space<vmem>>, vector<2x8x32xf32>
    %3 = vector.shape_cast %2 : vector<2x8x32xf32> to vector<16x32xf32>
    %c0_5 = arith.constant 0 : index
    %c0_6 = arith.constant 0 : index
    %4 = vector.load %arg3[%c0_5, %c0_6] : memref<32x32xf32, #tpu.memory_space<vmem>>, vector<32x32xf32>
    %cst = arith.constant dense<0.000000e+00> : vector<16x32xf32>
    %5 = tpu.matmul %1, %4, %cst {dimension_numbers = #tpu.dot_dimension_numbers<[1], [0], [0], [1], [0, 0, 1, 1], [], []>} : vector<16x32xf32>, vector<32x32xf32>, vector<16x32xf32> -> vector<16x32xf32>
    %c0_7 = arith.constant 0 : index
    %c0_8 = arith.constant 0 : index
    %6 = vector.load %arg4[%c0_7, %c0_8] : memref<1x32xf32, #tpu.memory_space<vmem>>, vector<1x32xf32>
    %7 = vector.broadcast %6 : vector<1x32xf32> to vector<16x32xf32>
    %8 = arith.addf %5, %7 : vector<16x32xf32>
    %c0_9 = arith.constant 0 : index
    %c0_10 = arith.constant 0 : index
    %9 = vector.load %arg5[%c0_9, %c0_10] : memref<32x64xf32, #tpu.memory_space<vmem>>, vector<32x64xf32>
    %cst_11 = arith.constant dense<0.000000e+00> : vector<16x64xf32>
    %10 = tpu.matmul %3, %9, %cst_11 {dimension_numbers = #tpu.dot_dimension_numbers<[1], [0], [0], [1], [0, 0, 1, 1], [], []>} : vector<16x32xf32>, vector<32x64xf32>, vector<16x64xf32> -> vector<16x64xf32>
    %c0_12 = arith.constant 0 : index
    %c0_13 = arith.constant 0 : index
    %11 = vector.load %arg6[%c0_12, %c0_13] : memref<1x64xf32, #tpu.memory_space<vmem>>, vector<1x64xf32>
    %12 = vector.broadcast %11 : vector<1x64xf32> to vector<16x64xf32>
    %13 = arith.addf %10, %12 : vector<16x64xf32>
    %14 = vector.shape_cast %8 : vector<16x32xf32> to vector<2x8x32xf32>
    %15 = vector.extract_strided_slice %13 {offsets = [0, 0], sizes = [16, 32], strides = [1, 1]} : vector<16x64xf32> to vector<16x32xf32>
    %16 = vector.shape_cast %15 : vector<16x32xf32> to vector<2x8x32xf32>
    %17 = vector.extract_strided_slice %13 {offsets = [0, 32], sizes = [16, 32], strides = [1, 1]} : vector<16x64xf32> to vector<16x32xf32>
    %18 = vector.shape_cast %17 : vector<16x32xf32> to vector<2x8x32xf32>
    "tpu.trace_start"() <{level = 10 : i32, message = "bqh,bkh->bqk"}> : () -> ()
    %cst_14 = arith.constant dense<0.000000e+00> : vector<2x8x8xf32>
    %19 = tpu.matmul %14, %16, %cst_14 {dimension_numbers = #tpu.dot_dimension_numbers<[2], [2], [1], [1], [0, 0, 0, 1, 1, 1], [0], [0]>} : vector<2x8x32xf32>, vector<2x8x32xf32>, vector<2x8x8xf32> -> vector<2x8x8xf32>
    "tpu.trace_stop"() : () -> ()
    %cst_15 = arith.constant dense<0xFF800000> : vector<2x8xf32>
    %20 = vector.multi_reduction <maximumf>, %19, %cst_15 [2] : vector<2x8x8xf32> to vector<2x8xf32>
    %21 = vector.shape_cast %20 : vector<2x8xf32> to vector<2x8x1xf32>
    %22 = vector.broadcast %21 : vector<2x8x1xf32> to vector<2x8x8xf32>
    %23 = arith.subf %19, %22 : vector<2x8x8xf32>
    %24 = math.exp %23 : vector<2x8x8xf32>
    %cst_16 = arith.constant dense<0.000000e+00> : vector<2x8xf32>
    %25 = vector.multi_reduction <add>, %24, %cst_16 [2] : vector<2x8x8xf32> to vector<2x8xf32>
    %26 = vector.shape_cast %25 : vector<2x8xf32> to vector<2x8x1xf32>
    %27 = tpu.reciprocal %26 {approx = true} : vector<2x8x1xf32> -> vector<2x8x1xf32>
    %28 = vector.broadcast %27 : vector<2x8x1xf32> to vector<2x8x8xf32>
    %29 = arith.mulf %24, %28 : vector<2x8x8xf32>
    "tpu.trace_start"() <{level = 10 : i32, message = "bqk,bkh->bqh"}> : () -> ()
    %cst_17 = arith.constant dense<0.000000e+00> : vector<2x8x32xf32>
    %30 = tpu.matmul %29, %18, %cst_17 {dimension_numbers = #tpu.dot_dimension_numbers<[2], [1], [1], [2], [0, 0, 0, 1, 1, 2], [0], [0]>} : vector<2x8x8xf32>, vector<2x8x32xf32>, vector<2x8x32xf32> -> vector<2x8x32xf32>
    "tpu.trace_stop"() : () -> ()
    %31 = vector.shape_cast %30 : vector<2x8x32xf32> to vector<16x32xf32>
    %c0_18 = arith.constant 0 : index
    %c0_19 = arith.constant 0 : index
    %32 = vector.load %arg7[%c0_18, %c0_19] : memref<32x32xf32, #tpu.memory_space<vmem>>, vector<32x32xf32>
    %cst_20 = arith.constant dense<0.000000e+00> : vector<16x32xf32>
    %33 = tpu.matmul %31, %32, %cst_20 {dimension_numbers = #tpu.dot_dimension_numbers<[1], [0], [0], [1], [0, 0, 1, 1], [], []>} : vector<16x32xf32>, vector<32x32xf32>, vector<16x32xf32> -> vector<16x32xf32>
    %c0_21 = arith.constant 0 : index
    %c0_22 = arith.constant 0 : index
    %34 = vector.load %arg8[%c0_21, %c0_22] : memref<1x32xf32, #tpu.memory_space<vmem>>, vector<1x32xf32>
    %35 = vector.broadcast %34 : vector<1x32xf32> to vector<16x32xf32>
    %36 = arith.addf %33, %35 : vector<16x32xf32>
    %37 = arith.addf %1, %36 : vector<16x32xf32>
    %c0_23 = arith.constant 0 : index
    %c0_24 = arith.constant 0 : index
    %38 = vector.load %arg9[%c0_23, %c0_24] : memref<32x128xf32, #tpu.memory_space<vmem>>, vector<32x128xf32>
    %cst_25 = arith.constant dense<0.000000e+00> : vector<16x128xf32>
    %39 = tpu.matmul %37, %38, %cst_25 {dimension_numbers = #tpu.dot_dimension_numbers<[1], [0], [0], [1], [0, 0, 1, 1], [], []>} : vector<16x32xf32>, vector<32x128xf32>, vector<16x128xf32> -> vector<16x128xf32>
    %c0_26 = arith.constant 0 : index
    %c0_27 = arith.constant 0 : index
    %40 = vector.load %arg10[%c0_26, %c0_27] : memref<1x128xf32, #tpu.memory_space<vmem>>, vector<1x128xf32>
    %41 = vector.broadcast %40 : vector<1x128xf32> to vector<16x128xf32>
    %42 = arith.addf %39, %41 : vector<16x128xf32>
    %43 = vector.shape_cast %42 : vector<16x128xf32> to vector<2x8x128xf32>
    %c0_28 = arith.constant 0 : index
    %c0_29 = arith.constant 0 : index
    %c0_30 = arith.constant 0 : index
    %44 = vector.load %arg12[%c0_28, %c0_29, %c0_30] : memref<2x8x128xf32, #tpu.memory_space<vmem>>, vector<2x8x128xf32>
    tpu.vector_store %arg12[%c0_28, %c0_29, %c0_30], %43 {strides = array<i32>} : memref<2x8x128xf32, #tpu.memory_space<vmem>>, vector<2x8x128xf32>,
    %45 = vector.shape_cast %37 : vector<16x32xf32> to vector<2x8x32xf32>
    %46 = vector.extract_strided_slice %45 {offsets = [0, 0, 0], sizes = [2, 1, 32], strides = [1, 1, 1]} : vector<2x8x32xf32> to vector<2x1x32xf32>
    %47 = vector.shape_cast %46 : vector<2x1x32xf32> to vector<2x32xf32>
    %c0_31 = arith.constant 0 : index
    %c0_32 = arith.constant 0 : index
    %c0_33 = arith.constant 0 : index
    %48 = vector.load %arg11[%c0_31, %c0_32, %c0_33] : memref<1x2x32xf32, #tpu.memory_space<vmem>>, vector<1x2x32xf32>
    %49 = vector.shape_cast %48 : vector<1x2x32xf32> to vector<2x32xf32>
    %50 = vector.shape_cast %47 : vector<2x32xf32> to vector<1x2x32xf32>
    tpu.vector_store %arg11[%c0_31, %c0_32, %c0_33], %50 {strides = array<i32>} : memref<1x2x32xf32, #tpu.memory_space<vmem>>, vector<1x2x32xf32>,
    return
  }
  func.func @transform_0(%arg0: i32) -> (i32, i32, i32) {
    %c0_i32 = arith.constant 0 : i32
    %c0_i32_0 = arith.constant 0 : i32
    %c0_i32_1 = arith.constant 0 : i32
    return %arg0, %c0_i32, %c0_i32_0 : i32, i32, i32
  }
  func.func @transform_1(%arg0: i32) -> (i32, i32, i32) {
    %c0_i32 = arith.constant 0 : i32
    %c0_i32_0 = arith.constant 0 : i32
    %c0_i32_1 = arith.constant 0 : i32
    return %arg0, %c0_i32, %c0_i32_0 : i32, i32, i32
  }
  func.func @transform_2(%arg0: i32) -> (i32, i32) {
    %c0_i32 = arith.constant 0 : i32
    %c0_i32_0 = arith.constant 0 : i32
    %c0_i32_1 = arith.constant 0 : i32
    return %c0_i32, %c0_i32_0 : i32, i32
  }
  func.func @transform_3(%arg0: i32) -> (i32, i32) {
    %c0_i32 = arith.constant 0 : i32
    %c0_i32_0 = arith.constant 0 : i32
    %c0_i32_1 = arith.constant 0 : i32
    return %c0_i32, %c0_i32_0 : i32, i32
  }
  func.func @transform_4(%arg0: i32) -> (i32, i32) {
    %c0_i32 = arith.constant 0 : i32
    %c0_i32_0 = arith.constant 0 : i32
    %c0_i32_1 = arith.constant 0 : i32
    return %c0_i32, %c0_i32_0 : i32, i32
  }
  func.func @transform_5(%arg0: i32) -> (i32, i32) {
    %c0_i32 = arith.constant 0 : i32
    %c0_i32_0 = arith.constant 0 : i32
    %c0_i32_1 = arith.constant 0 : i32
    return %c0_i32, %c0_i32_0 : i32, i32
  }
  func.func @transform_6(%arg0: i32) -> (i32, i32) {
    %c0_i32 = arith.constant 0 : i32
    %c0_i32_0 = arith.constant 0 : i32
    %c0_i32_1 = arith.constant 0 : i32
    return %c0_i32, %c0_i32_0 : i32, i32
  }
  func.func @transform_7(%arg0: i32) -> (i32, i32) {
    %c0_i32 = arith.constant 0 : i32
    %c0_i32_0 = arith.constant 0 : i32
    %c0_i32_1 = arith.constant 0 : i32
    return %c0_i32, %c0_i32_0 : i32, i32
  }
  func.func @transform_8(%arg0: i32) -> (i32, i32) {
    %c0_i32 = arith.constant 0 : i32
    %c0_i32_0 = arith.constant 0 : i32
    %c0_i32_1 = arith.constant 0 : i32
    return %c0_i32, %c0_i32_0 : i32, i32
  }
  func.func @transform_9(%arg0: i32) -> (i32, i32) {
    %c0_i32 = arith.constant 0 : i32
    %c0_i32_0 = arith.constant 0 : i32
    %c0_i32_1 = arith.constant 0 : i32
    return %c0_i32, %c0_i32_0 : i32, i32
  }
  func.func @transform_10(%arg0: i32) -> (i32, i32, i32) {
    %c0_i32 = arith.constant 0 : i32
    %c0_i32_0 = arith.constant 0 : i32
    %c0_i32_1 = arith.constant 0 : i32
    return %arg0, %c0_i32, %c0_i32_0 : i32, i32, i32
  }
  func.func @transform_11(%arg0: i32) -> (i32, i32, i32) {
    %c0_i32 = arith.constant 0 : i32
    %c0_i32_0 = arith.constant 0 : i32
    %c0_i32_1 = arith.constant 0 : i32
    return %arg0, %c0_i32, %c0_i32_0 : i32, i32, i32
  }
}

</mosaic_0001>

<llo_original>
// kernel: tpu_custom_call.1
$region0: #{tpu_custom_call.1}
  #allocation0 [shape = 'u32[]', space=smem, size = 0x4, offset = 0x4, fixed_abs, tag = 'smem constant byte address 0x4 - core index']
  #allocation1 [shape = 'u32[144,128]{1,0:T(1,128)}', space=vmem, size = 0x12000, scoped, tag = 'internal scratch']
  %s0 = inlined_call_operand.hbm [shape: f32[4,8,32], index: 0, kind: input, shape index: {}]
  %s1 = inlined_call_operand.hbm [shape: f32[4,8,32], index: 1, kind: input, shape index: {}]
  %s2 = inlined_call_operand.hbm [shape: f32[32,32], index: 2, kind: input, shape index: {}]
  %s3 = inlined_call_operand.vmem [shape: f32[1,32], index: 3, kind: input, shape index: {}]
  %s4 = inlined_call_operand.hbm [shape: f32[32,64], index: 4, kind: input, shape index: {}]
  %s5 = inlined_call_operand.vmem [shape: f32[1,64], index: 5, kind: input, shape index: {}]
  %s6 = inlined_call_operand.hbm [shape: f32[32,32], index: 6, kind: input, shape index: {}]
  %s7 = inlined_call_operand.vmem [shape: f32[1,32], index: 7, kind: input, shape index: {}]
  %s8 = inlined_call_operand.hbm [shape: f32[32,128], index: 8, kind: input, shape index: {}]
  %s9 = inlined_call_operand.vmem [shape: f32[1,128], index: 9, kind: input, shape index: {}]
  %s10 = inlined_call_operand.hbm [shape: f32[2,2,32], index: 10, kind: output, shape index: {0}]
  %s11 = inlined_call_operand.hbm [shape: f32[4,8,128], index: 11, kind: output, shape index: {1}]
  %12 = xla_tuple %s10, %s11
  %s13 = sld [smem:[#allocation0]]
  $region105: #{tpu_custom_call.1} parent=0
    _
  %s15 = ssub.s32 1, %s13
  %s16 = scalar_select 0, %s15, %s13
  $region1: #{tpu_custom_call.1} parent=0
    #allocation2 [shape = 'u8[16384]{0}', space=vmem, size = 0x4000, scoped, tag = 'input window, operand 0']
    #allocation3 [shape = 's32[2]{0}', space=sflag, size = 0x8, scoped, tag = 'scoped memory for tpu_custom_call.1']
    #allocation4 [shape = 's32[2]{0}', space=sflag, size = 0x8, scoped, tag = 'scoped memory for tpu_custom_call.1']
    #allocation5 [shape = 'u8[16384]{0}', space=vmem, size = 0x4000, scoped, tag = 'input window, operand 1']
    #allocation6 [shape = 's32[2]{0}', space=sflag, size = 0x8, scoped, tag = 'scoped memory for tpu_custom_call.1']
    #allocation7 [shape = 'u8[16384]{0}', space=vmem, size = 0x4000, scoped, tag = 'input window, operand 2, single buffered']
    #allocation8 [shape = 'u8[16384]{0}', space=vmem, size = 0x4000, scoped, tag = 'input window, operand 4, single buffered']
    #allocation9 [shape = 's32[1]{0}', space=sflag, size = 0x4, scoped, tag = 'scoped memory for tpu_custom_call.1']
    #allocation10 [shape = 'u8[16384]{0}', space=vmem, size = 0x4000, scoped, tag = 'input window, operand 6, single buffered']
    #allocation11 [shape = 'u8[16384]{0}', space=vmem, size = 0x4000, scoped, tag = 'input window, operand 8, single buffered']
    #allocation12 [shape = 's32[1]{0}', space=sflag, size = 0x4, scoped, tag = 'scoped memory for tpu_custom_call.1']
    #allocation13 [shape = 'u8[2048]{0}', space=vmem, size = 0x800, scoped, tag = 'output window, operand 0']
    #allocation14 [shape = 'u8[16384]{0}', space=vmem, size = 0x4000, scoped, tag = 'output window, operand 1']
    #allocation15 [shape = 's32[2]{0}', space=sflag, size = 0x8, scoped, tag = 'scoped memory for tpu_custom_call.1']
    %17 = vsyncpa [#allocation3], 0
    %s18 = scalar_lea.sflag [#allocation3], 1
    %19 = vsyncpa %s18, 0
    %20 = vsyncpa [#allocation6], 0
    %s21 = scalar_lea.sflag [#allocation6], 1
    %22 = vsyncpa %s21, 0
    %23 = vsyncpa [#allocation9], 0
    %24 = vsyncpa [#allocation12], 0
    %25 = vsyncpa [#allocation4], 0
    %s26 = scalar_lea.sflag [#allocation4], 1
    %27 = vsyncpa %s26, 0
    %28 = vsyncpa [#allocation15], 0
    %s29 = scalar_lea.sflag [#allocation15], 1
    %30 = vsyncpa %s29, 0
    loop: start=0, step=1, limit=4
    $region2: #{tpu_custom_call.1} parent=1 // loop_pre_header
      _
    $region3: #{tpu_custom_call.1} parent=1 // loop_header
      %s32 = sphi 0, %s36
      %p33 = scmp.ge.s32.totalorder %s32, 4
      %s42 = sphi 0, %s44
      %s45 = sphi 0, %s42
      %s46 = sphi 0, %s45
      %s62 = sphi 0, %s46
      %s68 = sphi 0, %s70
      %s71 = sphi 0, %s68
      %s72 = sphi 0, %s71
      %s88 = sphi 0, %s72
      %s92 = sphi 0, %s92
      %s94 = sphi 0, %s92
      %s95 = sphi 0, %s94
      %s109 = sphi 0, %s95
      %s113 = sphi 0, %s113
      %s115 = sphi 0, %s113
      %s116 = sphi 0, %s115
      %s130 = sphi 0, %s116
      %s134 = sphi 0, %s134
      %s136 = sphi 0, %s134
      %s137 = sphi 0, %s136
      %s151 = sphi 0, %s137
      %s155 = sphi 0, %s155
      %s157 = sphi 0, %s155
      %s158 = sphi 0, %s157
      %s172 = sphi 0, %s158
      %s176 = sphi 0, %s176
      %s178 = sphi 0, %s176
      %s179 = sphi 0, %s178
      %s193 = sphi 0, %s179
      %s197 = sphi 0, %s197
      %s199 = sphi 0, %s197
      %s200 = sphi 0, %s199
      %s214 = sphi 0, %s200
      %s218 = sphi 0, %s218
      %s220 = sphi 0, %s218
      %s221 = sphi 0, %s220
      %s235 = sphi 0, %s221
      %s239 = sphi 0, %s239
      %s241 = sphi 0, %s239
      %s242 = sphi 0, %s241
      %s256 = sphi 0, %s242
      %s262 = sphi 0, %s264
      %s265 = sphi 0, %s262
      %s266 = sphi 0, %s265
      %s282 = sphi 0, %s266
      %s288 = sphi 0, %s290
      %s291 = sphi 0, %s288
      %s292 = sphi 0, %s291
      %s308 = sphi 0, %s292
    $region4: #{tpu_custom_call.1} parent=1 // loop_header_branch
      %35 = sbr.rel (%p33) target = $region8
    $region5: #{tpu_custom_call.1} parent=1 // loop_body
      %s37 = ssub.s32 %s32, 1
      %s38 = ssub.s32 %s32, 2
      %s39 = sadd.s32 %s32, 1
      %s40 = ssub.s32 %s32, %s39
      %p41 = scmp.eq.s32.totalorder %s40, 0
      %s43 = sadd.s32 %s42, 1
      %s44 = scalar_select %p41, %s42, %s43
      %p47 = pneg %p41
      %p48 = scmp.eq.s32.totalorder %s32, 1
      %p49 = por %p47, %p48
      %p50 = scmp.ne.s32.totalorder %s42, %s45
      %p51 = scmp.eq.s32.totalorder %s32, 0
      %p52 = por %p50, %p51
      %p53 = scmp.ne.s32.totalorder %s42, %s45
      %p54 = scmp.eq.s32.totalorder %s37, 1
      %p55 = por %p53, %p54
      %p56 = scmp.ne.s32.totalorder %s45, %s46
      %p57 = scmp.eq.s32.totalorder %s37, 0
      %p58 = por %p56, %p57
      %p59 = scmp.ne.s32.totalorder %s45, %s46
      %p60 = scmp.eq.s32.totalorder %s38, 1
      %p61 = por %p59, %p60
      %p63 = scmp.ne.s32.totalorder %s46, %s62
      %p64 = scmp.eq.s32.totalorder %s38, 0
      %p65 = por %p63, %p64
      %s66 = ssub.s32 %s32, %s39
      %p67 = scmp.eq.s32.totalorder %s66, 0
      %s69 = sadd.s32 %s68, 1
      %s70 = scalar_select %p67, %s68, %s69
      %p73 = pneg %p67
      %p74 = scmp.eq.s32.totalorder %s32, 1
      %p75 = por %p73, %p74
      %p76 = scmp.ne.s32.totalorder %s68, %s71
      %p77 = scmp.eq.s32.totalorder %s32, 0
      %p78 = por %p76, %p77
      %p79 = scmp.ne.s32.totalorder %s68, %s71
      %p80 = scmp.eq.s32.totalorder %s37, 1
      %p81 = por %p79, %p80
      %p82 = scmp.ne.s32.totalorder %s71, %s72
      %p83 = scmp.eq.s32.totalorder %s37, 0
      %p84 = por %p82, %p83
      %p85 = scmp.ne.s32.totalorder %s71, %s72
      %p86 = scmp.eq.s32.totalorder %s38, 1
      %p87 = por %p85, %p86
      %p89 = scmp.ne.s32.totalorder %s72, %s88
      %p90 = scmp.eq.s32.totalorder %s38, 0
      %p91 = por %p89, %p90
      %s93 = sadd.s32 %s92, 1
      %p96 = scmp.eq.s32.totalorder %s32, 1
      %p97 = scmp.ne.s32.totalorder %s92, %s94
      %p98 = scmp.eq.s32.totalorder %s32, 0
      %p99 = por %p97, %p98
      %p100 = scmp.ne.s32.totalorder %s92, %s94
      %p101 = scmp.eq.s32.totalorder %s37, 1
      %p102 = por %p100, %p101
      %p103 = scmp.ne.s32.totalorder %s94, %s95
      %p104 = scmp.eq.s32.totalorder %s37, 0
      %p105 = por %p103, %p104
      %p106 = scmp.ne.s32.totalorder %s94, %s95
      %p107 = scmp.eq.s32.totalorder %s38, 1
      %p108 = por %p106, %p107
      %p110 = scmp.ne.s32.totalorder %s95, %s109
      %p111 = scmp.eq.s32.totalorder %s38, 0
      %p112 = por %p110, %p111
      %s114 = sadd.s32 %s113, 1
      %p117 = scmp.eq.s32.totalorder %s32, 1
      %p118 = scmp.ne.s32.totalorder %s113, %s115
      %p119 = scmp.eq.s32.totalorder %s32, 0
      %p120 = por %p118, %p119
      %p121 = scmp.ne.s32.totalorder %s113, %s115
      %p122 = scmp.eq.s32.totalorder %s37, 1
      %p123 = por %p121, %p122
      %p124 = scmp.ne.s32.totalorder %s115, %s116
      %p125 = scmp.eq.s32.totalorder %s37, 0
      %p126 = por %p124, %p125
      %p127 = scmp.ne.s32.totalorder %s115, %s116
      %p128 = scmp.eq.s32.totalorder %s38, 1
      %p129 = por %p127, %p128
      %p131 = scmp.ne.s32.totalorder %s116, %s130
      %p132 = scmp.eq.s32.totalorder %s38, 0
      %p133 = por %p131, %p132
      %s135 = sadd.s32 %s134, 1
      %p138 = scmp.eq.s32.totalorder %s32, 1
      %p139 = scmp.ne.s32.totalorder %s134, %s136
      %p140 = scmp.eq.s32.totalorder %s32, 0
      %p141 = por %p139, %p140
      %p142 = scmp.ne.s32.totalorder %s134, %s136
      %p143 = scmp.eq.s32.totalorder %s37, 1
      %p144 = por %p142, %p143
      %p145 = scmp.ne.s32.totalorder %s136, %s137
      %p146 = scmp.eq.s32.totalorder %s37, 0
      %p147 = por %p145, %p146
      %p148 = scmp.ne.s32.totalorder %s136, %s137
      %p149 = scmp.eq.s32.totalorder %s38, 1
      %p150 = por %p148, %p149
      %p152 = scmp.ne.s32.totalorder %s137, %s151
      %p153 = scmp.eq.s32.totalorder %s38, 0
      %p154 = por %p152, %p153
      %s156 = sadd.s32 %s155, 1
      %p159 = scmp.eq.s32.totalorder %s32, 1
      %p160 = scmp.ne.s32.totalorder %s155, %s157
      %p161 = scmp.eq.s32.totalorder %s32, 0
      %p162 = por %p160, %p161
      %p163 = scmp.ne.s32.totalorder %s155, %s157
      %p164 = scmp.eq.s32.totalorder %s37, 1
      %p165 = por %p163, %p164
      %p166 = scmp.ne.s32.totalorder %s157, %s158
      %p167 = scmp.eq.s32.totalorder %s37, 0
      %p168 = por %p166, %p167
      %p169 = scmp.ne.s32.totalorder %s157, %s158
      %p170 = scmp.eq.s32.totalorder %s38, 1
      %p171 = por %p169, %p170
      %p173 = scmp.ne.s32.totalorder %s158, %s172
      %p174 = scmp.eq.s32.totalorder %s38, 0
      %p175 = por %p173, %p174
      %s177 = sadd.s32 %s176, 1
      %p180 = scmp.eq.s32.totalorder %s32, 1
      %p181 = scmp.ne.s32.totalorder %s176, %s178
      %p182 = scmp.eq.s32.totalorder %s32, 0
      %p183 = por %p181, %p182
      %p184 = scmp.ne.s32.totalorder %s176, %s178
      %p185 = scmp.eq.s32.totalorder %s37, 1
      %p186 = por %p184, %p185
      %p187 = scmp.ne.s32.totalorder %s178, %s179
      %p188 = scmp.eq.s32.totalorder %s37, 0
      %p189 = por %p187, %p188
      %p190 = scmp.ne.s32.totalorder %s178, %s179
      %p191 = scmp.eq.s32.totalorder %s38, 1
      %p192 = por %p190, %p191
      %p194 = scmp.ne.s32.totalorder %s179, %s193
      %p195 = scmp.eq.s32.totalorder %s38, 0
      %p196 = por %p194, %p195
      %s198 = sadd.s32 %s197, 1
      %p201 = scmp.eq.s32.totalorder %s32, 1
      %p202 = scmp.ne.s32.totalorder %s197, %s199
      %p203 = scmp.eq.s32.totalorder %s32, 0
      %p204 = por %p202, %p203
      %p205 = scmp.ne.s32.totalorder %s197, %s199
      %p206 = scmp.eq.s32.totalorder %s37, 1
      %p207 = por %p205, %p206
      %p208 = scmp.ne.s32.totalorder %s199, %s200
      %p209 = scmp.eq.s32.totalorder %s37, 0
      %p210 = por %p208, %p209
      %p211 = scmp.ne.s32.totalorder %s199, %s200
      %p212 = scmp.eq.s32.totalorder %s38, 1
      %p213 = por %p211, %p212
      %p215 = scmp.ne.s32.totalorder %s200, %s214
      %p216 = scmp.eq.s32.totalorder %s38, 0
      %p217 = por %p215, %p216
      %s219 = sadd.s32 %s218, 1
      %p222 = scmp.eq.s32.totalorder %s32, 1
      %p223 = scmp.ne.s32.totalorder %s218, %s220
      %p224 = scmp.eq.s32.totalorder %s32, 0
      %p225 = por %p223, %p224
      %p226 = scmp.ne.s32.totalorder %s218, %s220
      %p227 = scmp.eq.s32.totalorder %s37, 1
      %p228 = por %p226, %p227
      %p229 = scmp.ne.s32.totalorder %s220, %s221
      %p230 = scmp.eq.s32.totalorder %s37, 0
      %p231 = por %p229, %p230
      %p232 = scmp.ne.s32.totalorder %s220, %s221
      %p233 = scmp.eq.s32.totalorder %s38, 1
      %p234 = por %p232, %p233
      %p236 = scmp.ne.s32.totalorder %s221, %s235
      %p237 = scmp.eq.s32.totalorder %s38, 0
      %p238 = por %p236, %p237
      %s240 = sadd.s32 %s239, 1
      %p243 = scmp.eq.s32.totalorder %s32, 1
      %p244 = scmp.ne.s32.totalorder %s239, %s241
      %p245 = scmp.eq.s32.totalorder %s32, 0
      %p246 = por %p244, %p245
      %p247 = scmp.ne.s32.totalorder %s239, %s241
      %p248 = scmp.eq.s32.totalorder %s37, 1
      %p249 = por %p247, %p248
      %p250 = scmp.ne.s32.totalorder %s241, %s242
      %p251 = scmp.eq.s32.totalorder %s37, 0
      %p252 = por %p250, %p251
      %p253 = scmp.ne.s32.totalorder %s241, %s242
      %p254 = scmp.eq.s32.totalorder %s38, 1
      %p255 = por %p253, %p254
      %p257 = scmp.ne.s32.totalorder %s242, %s256
      %p258 = scmp.eq.s32.totalorder %s38, 0
      %p259 = por %p257, %p258
      %s260 = ssub.s32 %s32, %s39
      %p261 = scmp.eq.s32.totalorder %s260, 0
      %s263 = sadd.s32 %s262, 1
      %s264 = scalar_select %p261, %s262, %s263
      %p267 = pneg %p261
      %p268 = scmp.eq.s32.totalorder %s32, 1
      %p269 = por %p267, %p268
      %p270 = scmp.ne.s32.totalorder %s262, %s265
      %p271 = scmp.eq.s32.totalorder %s32, 0
      %p272 = por %p270, %p271
      %p273 = scmp.ne.s32.totalorder %s262, %s265
      %p274 = scmp.eq.s32.totalorder %s37, 1
      %p275 = por %p273, %p274
      %p276 = scmp.ne.s32.totalorder %s265, %s266
      %p277 = scmp.eq.s32.totalorder %s37, 0
      %p278 = por %p276, %p277
      %p279 = scmp.ne.s32.totalorder %s265, %s266
      %p280 = scmp.eq.s32.totalorder %s38, 1
      %p281 = por %p279, %p280
      %p283 = scmp.ne.s32.totalorder %s266, %s282
      %p284 = scmp.eq.s32.totalorder %s38, 0
      %p285 = por %p283, %p284
      %s286 = ssub.s32 %s32, %s39
      %p287 = scmp.eq.s32.totalorder %s286, 0
      %s289 = sadd.s32 %s288, 1
      %s290 = scalar_select %p287, %s288, %s289
      %p293 = pneg %p287
      %p294 = scmp.eq.s32.totalorder %s32, 1
      %p295 = por %p293, %p294
      %p296 = scmp.ne.s32.totalorder %s288, %s291
      %p297 = scmp.eq.s32.totalorder %s32, 0
      %p298 = por %p296, %p297
      %p299 = scmp.ne.s32.totalorder %s288, %s291
      %p300 = scmp.eq.s32.totalorder %s37, 1
      %p301 = por %p299, %p300
      %p302 = scmp.ne.s32.totalorder %s291, %s292
      %p303 = scmp.eq.s32.totalorder %s37, 0
      %p304 = por %p302, %p303
      %p305 = scmp.ne.s32.totalorder %s291, %s292
      %p306 = scmp.eq.s32.totalorder %s38, 1
      %p307 = por %p305, %p306
      %p309 = scmp.ne.s32.totalorder %s292, %s308
      %p310 = scmp.eq.s32.totalorder %s38, 0
      %p311 = por %p309, %p310
      %p312 = scmp.le.s32.totalorder 1, %s32
      %p313 = scmp.lt.s32.totalorder %s32, 3
      %p314 = pnand %p312, %p313
      %p315 = pneg %p314
      // Predicated region
      $region9: #{tpu_custom_call.1} parent=5 // pred_check
        _
      $region10: #{tpu_custom_call.1} parent=5 // pred_check_branch
        %317 = sbr.rel (%p314) target = $region12
      $region11: #{tpu_custom_call.1} parent=5 // pred_region
        %s318 = ssub.s32 %s32, 1
        // Predicated region
        $region13: #{tpu_custom_call.1} parent=11 // pred_check
          %p319 = pneg %p105
        $region14: #{tpu_custom_call.1} parent=11 // pred_check_branch
          %321 = sbr.rel (%p319) target = $region16
        $region15: #{tpu_custom_call.1} parent=11 // pred_region
          %s323 = ssub.s32 512, 512
          %324 = vsyncadd [#allocation6], %s323
          %s325 = sshll.u32 [#allocation7], 4
          %s326 = int_to_ptr.vmem [resolvable:$true] %s325
          %331 = dma.hbm_to_vmem [thread:$0]  %s2, 512, %s326, [#allocation6], 128, 128, 8
        $region16: #{tpu_custom_call.1} parent=11 // pred_fallthru
          _
        // Predicated region
        $region17: #{tpu_custom_call.1} parent=11 // pred_check
          %p332 = pneg %p126
        $region18: #{tpu_custom_call.1} parent=11 // pred_check_branch
          %334 = sbr.rel (%p332) target = $region20
        $region19: #{tpu_custom_call.1} parent=11 // pred_region
          _
        $region20: #{tpu_custom_call.1} parent=11 // pred_fallthru
          _
        // Predicated region
        $region21: #{tpu_custom_call.1} parent=11 // pred_check
          %p335 = pneg %p147
        $region22: #{tpu_custom_call.1} parent=11 // pred_check_branch
          %337 = sbr.rel (%p335) target = $region24
        $region23: #{tpu_custom_call.1} parent=11 // pred_region
          %s339 = ssub.s32 512, 512
          %340 = vsyncadd [#allocation9], %s339
          %s341 = sshll.u32 [#allocation8], 4
          %s342 = int_to_ptr.vmem [resolvable:$true] %s341
          %347 = dma.hbm_to_vmem [thread:$0]  %s4, 512, %s342, [#allocation9], 128, 128, 8
        $region24: #{tpu_custom_call.1} parent=11 // pred_fallthru
          _
        // Predicated region
        $region25: #{tpu_custom_call.1} parent=11 // pred_check
          %p348 = pneg %p168
        $region26: #{tpu_custom_call.1} parent=11 // pred_check_branch
          %350 = sbr.rel (%p348) target = $region28
        $region27: #{tpu_custom_call.1} parent=11 // pred_region
          _
        $region28: #{tpu_custom_call.1} parent=11 // pred_fallthru
          _
        // Predicated region
        $region29: #{tpu_custom_call.1} parent=11 // pred_check
          %p351 = pneg %p189
        $region30: #{tpu_custom_call.1} parent=11 // pred_check_branch
          %353 = sbr.rel (%p351) target = $region32
        $region31: #{tpu_custom_call.1} parent=11 // pred_region
          %s355 = ssub.s32 512, 512
          %356 = vsyncadd [#allocation9], %s355
          %s357 = sshll.u32 [#allocation10], 4
          %s358 = int_to_ptr.vmem [resolvable:$true] %s357
          %363 = dma.hbm_to_vmem [thread:$0]  %s6, 512, %s358, [#allocation9], 128, 128, 8
        $region32: #{tpu_custom_call.1} parent=11 // pred_fallthru
          _
        // Predicated region
        $region33: #{tpu_custom_call.1} parent=11 // pred_check
          %p364 = pneg %p210
        $region34: #{tpu_custom_call.1} parent=11 // pred_check_branch
          %366 = sbr.rel (%p364) target = $region36
        $region35: #{tpu_custom_call.1} parent=11 // pred_region
          _
        $region36: #{tpu_custom_call.1} parent=11 // pred_fallthru
          _
        // Predicated region
        $region37: #{tpu_custom_call.1} parent=11 // pred_check
          %p367 = pneg %p231
        $region38: #{tpu_custom_call.1} parent=11 // pred_check_branch
          %369 = sbr.rel (%p367) target = $region40
        $region39: #{tpu_custom_call.1} parent=11 // pred_region
          %s371 = ssub.s32 512, 512
          %372 = vsyncadd [#allocation12], %s371
          %s373 = sshll.u32 [#allocation11], 4
          %s374 = int_to_ptr.vmem [resolvable:$true] %s373
          %379 = dma.hbm_to_vmem [thread:$0]  %s8, 512, %s374, [#allocation12], 128, 128, 8
        $region40: #{tpu_custom_call.1} parent=11 // pred_fallthru
          _
        // Predicated region
        $region41: #{tpu_custom_call.1} parent=11 // pred_check
          %p380 = pneg %p252
        $region42: #{tpu_custom_call.1} parent=11 // pred_check_branch
          %382 = sbr.rel (%p380) target = $region44
        $region43: #{tpu_custom_call.1} parent=11 // pred_region
          _
        $region44: #{tpu_custom_call.1} parent=11 // pred_fallthru
          _
      $region12: #{tpu_custom_call.1} parent=5 // pred_fallthru
        _
      %p383 = scmp.lt.s32.totalorder %s32, 2
      // Predicated region
      $region45: #{tpu_custom_call.1} parent=5 // pred_check
        %p384 = pneg %p383
      $region46: #{tpu_custom_call.1} parent=5 // pred_check_branch
        %386 = sbr.rel (%p384) target = $region48
      $region47: #{tpu_custom_call.1} parent=5 // pred_region
        // Predicated region
        $region49: #{tpu_custom_call.1} parent=47 // pred_check
          %p387 = pneg %p52
        $region50: #{tpu_custom_call.1} parent=47 // pred_check_branch
          %389 = sbr.rel (%p387) target = $region52
        $region51: #{tpu_custom_call.1} parent=47 // pred_region
          %s390 = sand.u32 %s42, 1
          %s391 = scalar_lea.sflag [#allocation3], %s390
          %s392 = sand.u32 %s42, 1
          %s393 = smul.addr %s392, 16
          %s394 = scalar_lea.vmem [#allocation2], %s393
          %s395 = smul.u32 2, %s32
          %s397 = ssub.s32 256, 256
          %398 = vsyncadd %s391, %s397
          %s399 = smul.addr %s395, 128
          %s400 = scalar_lea.hbm %s0, %s399
          %s401 = sshll.u32 %s394, 4
          %s402 = int_to_ptr.vmem [resolvable:$true] %s401
          %407 = dma.hbm_to_vmem [thread:$0]  %s400, 256, %s402, %s391, 128, 128, 8
        $region52: #{tpu_custom_call.1} parent=47 // pred_fallthru
          _
        // Predicated region
        $region53: #{tpu_custom_call.1} parent=47 // pred_check
          %p408 = pneg %p78
        $region54: #{tpu_custom_call.1} parent=47 // pred_check_branch
          %410 = sbr.rel (%p408) target = $region56
        $region55: #{tpu_custom_call.1} parent=47 // pred_region
          %s411 = sand.u32 %s32, 1
          %s412 = scalar_lea.sflag [#allocation6], %s411
          %s413 = sand.u32 %s68, 1
          %s414 = smul.addr %s413, 16
          %s415 = scalar_lea.vmem [#allocation5], %s414
          %s416 = smul.u32 2, %s32
          %s418 = ssub.s32 256, 256
          %419 = vsyncadd %s412, %s418
          %s420 = smul.addr %s416, 128
          %s421 = scalar_lea.hbm %s1, %s420
          %s422 = sshll.u32 %s415, 4
          %s423 = int_to_ptr.vmem [resolvable:$true] %s422
          %428 = dma.hbm_to_vmem [thread:$0]  %s421, 256, %s423, %s412, 128, 128, 8
        $region56: #{tpu_custom_call.1} parent=47 // pred_fallthru
          _
      $region48: #{tpu_custom_call.1} parent=5 // pred_fallthru
        _
      %p429 = scmp.le.s32.totalorder 1, %s32
      %p430 = scmp.lt.s32.totalorder %s32, 3
      %p431 = pnand %p429, %p430
      %p432 = pneg %p431
      // Predicated region
      $region57: #{tpu_custom_call.1} parent=5 // pred_check
        _
      $region58: #{tpu_custom_call.1} parent=5 // pred_check_branch
        %434 = sbr.rel (%p431) target = $region60
      $region59: #{tpu_custom_call.1} parent=5 // pred_region
        %s435 = ssub.s32 %s32, 1
        %s436 = sand.u32 %s45, 1
        %s437 = scalar_lea.sflag [#allocation3], %s436
        %s438 = sand.u32 %s45, 1
        %s439 = smul.addr %s438, 16
        %s440 = scalar_lea.vmem [#allocation2], %s439
        // Predicated region
        $region61: #{tpu_custom_call.1} parent=59 // pred_check
          %p441 = pneg %p58
        $region62: #{tpu_custom_call.1} parent=59 // pred_check_branch
          %443 = sbr.rel (%p441) target = $region64
        $region63: #{tpu_custom_call.1} parent=59 // pred_region
          %444 = dma.done %s437, 256
        $region64: #{tpu_custom_call.1} parent=59 // pred_fallthru
          _
        %s445 = sand.u32 %s37, 1
        %s446 = scalar_lea.sflag [#allocation6], %s445
        %s447 = sand.u32 %s71, 1
        %s448 = smul.addr %s447, 16
        %s449 = scalar_lea.vmem [#allocation5], %s448
        // Predicated region
        $region65: #{tpu_custom_call.1} parent=59 // pred_check
          %p450 = pneg %p84
        $region66: #{tpu_custom_call.1} parent=59 // pred_check_branch
          %452 = sbr.rel (%p450) target = $region68
        $region67: #{tpu_custom_call.1} parent=59 // pred_region
          %453 = dma.done %s446, 256
        $region68: #{tpu_custom_call.1} parent=59 // pred_fallthru
          _
        // Predicated region
        $region69: #{tpu_custom_call.1} parent=59 // pred_check
          %p454 = pneg %p105
        $region70: #{tpu_custom_call.1} parent=59 // pred_check_branch
          %456 = sbr.rel (%p454) target = $region72
        $region71: #{tpu_custom_call.1} parent=59 // pred_region
          %457 = dma.done [#allocation6], 512
        $region72: #{tpu_custom_call.1} parent=59 // pred_fallthru
          _
        // Predicated region
        $region73: #{tpu_custom_call.1} parent=59 // pred_check
          %p458 = pneg %p147
        $region74: #{tpu_custom_call.1} parent=59 // pred_check_branch
          %460 = sbr.rel (%p458) target = $region76
        $region75: #{tpu_custom_call.1} parent=59 // pred_region
          %461 = dma.done [#allocation9], 512
        $region76: #{tpu_custom_call.1} parent=59 // pred_fallthru
          _
        // Predicated region
        $region77: #{tpu_custom_call.1} parent=59 // pred_check
          %p462 = pneg %p189
        $region78: #{tpu_custom_call.1} parent=59 // pred_check_branch
          %464 = sbr.rel (%p462) target = $region80
        $region79: #{tpu_custom_call.1} parent=59 // pred_region
          %465 = dma.done [#allocation9], 512
        $region80: #{tpu_custom_call.1} parent=59 // pred_fallthru
          _
        // Predicated region
        $region81: #{tpu_custom_call.1} parent=59 // pred_check
          %p466 = pneg %p231
        $region82: #{tpu_custom_call.1} parent=59 // pred_check_branch
          %468 = sbr.rel (%p466) target = $region84
        $region83: #{tpu_custom_call.1} parent=59 // pred_region
          %469 = dma.done [#allocation12], 512
        $region84: #{tpu_custom_call.1} parent=59 // pred_fallthru
          _
        %s470 = sand.u32 %s45, 1
        %s471 = scalar_lea.sflag [#allocation3], %s470
        %s472 = sand.u32 %s45, 1
        %s473 = smul.addr %s472, 16
        %s474 = scalar_lea.vmem [#allocation2], %s473
        %p475 = pneg %p58
        %p476 = pneg %p55
        %s477 = sand.u32 %s37, 1
        %s478 = scalar_lea.sflag [#allocation6], %s477
        %s479 = sand.u32 %s71, 1
        %s480 = smul.addr %s479, 16
        %s481 = scalar_lea.vmem [#allocation5], %s480
        %p482 = pneg %p84
        %p483 = pneg %p81
        %p484 = pneg %p105
        %p485 = pneg %p102
        %p486 = pneg %p126
        %p487 = pneg %p123
        %p488 = pneg %p147
        %p489 = pneg %p144
        %p490 = pneg %p168
        %p491 = pneg %p165
        %p492 = pneg %p189
        %p493 = pneg %p186
        %p494 = pneg %p210
        %p495 = pneg %p207
        %p496 = pneg %p231
        %p497 = pneg %p228
        %p498 = pneg %p252
        %p499 = pneg %p249
        %p500 = pneg %p278
        %p501 = pneg %p275
        %s502 = sand.u32 %s265, 1
        %s503 = scalar_lea.sflag [#allocation4], %s502
        %s504 = sand.u32 %s265, 1
        %s505 = smul.addr %s504, 2
        %s506 = scalar_lea.vmem [#allocation13], %s505
        %p507 = pneg %p304
        %p508 = pneg %p301
        %s509 = sand.u32 %s291, 1
        %s510 = scalar_lea.sflag [#allocation15], %s509
        %s511 = sand.u32 %s291, 1
        %s512 = smul.addr %s511, 16
        %s513 = scalar_lea.vmem [#allocation14], %s512
        %s514 = smul.u32 2, %s37
        %s515 = smul.u32 2, %s37
        %s516 = smul.u32 2, %s37
        %v517 = vld [vmem:[%s440] sm:$0xff]
        %v518 = vld [vmem:[%s440 + $0x8] sm:$0xff]
        %v519 = vld [vmem:[%s449] sm:$0xff]
        %v520 = vld [vmem:[%s449 + $0x8] sm:$0xff]
        %v521 = vld [vmem:[#allocation7] sm:$0xff]
        %v522 = vld [vmem:[#allocation7 + $0x8] sm:$0xff]
        %v523 = vld [vmem:[#allocation7 + $0x10] sm:$0xff]
        %v524 = vld [vmem:[#allocation7 + $0x18] sm:$0xff]
        %v525 = vld [vmem:[%s3] sm:$0x1]
        %v527 = vlaneseq
        %v528 = vshrl.u32 %v527, 7
        %v529 = vsub.s32 0, %v528
        %v530 = vrot.slane %v525, %v529
        %vm532 = vcmask 261120
        %v534 = vsel %vm532, %v517, 0
        %v537 = vsel %vm532, %v518, 0
        %539 = vmatprep.subr.mxu0 0.0
        %540 = vmatpush1.msra.mxu0 %v521
        %541 = vmatprep.subr.mxu0 0.0
        %542 = vmatpush1.msra.mxu0 %v522
        %543 = vmatprep.subr.mxu0 0.0
        %544 = vmatpush1.msra.mxu0 %v523
        %545 = vmatprep.subr.mxu0 0.0
        %546 = vmatpush1.msra.mxu0 %v524
        %547 = vmatprep.subr.mxu0 0.0
        %548 = vmatpush1.msra.mxu0 0.0
        %549 = vmatprep.subr.mxu0 0.0
        %550 = vmatpush1.msra.mxu0 0.0
        %551 = vmatprep.subr.mxu0 0.0
        %552 = vmatpush1.msra.mxu0 0.0
        %553 = vmatprep.subr.mxu0 0.0
        %554 = vmatpush1.msra.mxu0 0.0
        %555 = vmatprep.subr.mxu0 0.0
        %556 = vmatpush1.msra.mxu0 0.0
        %557 = vmatprep.subr.mxu0 0.0
        %558 = vmatpush1.msra.mxu0 0.0
        %559 = vmatprep.subr.mxu0 0.0
        %560 = vmatpush1.msra.mxu0 0.0
        %561 = vmatprep.subr.mxu0 0.0
        %562 = vmatpush1.msra.mxu0 0.0
        %563 = vmatprep.subr.mxu0 0.0
        %564 = vmatpush1.msra.mxu0 0.0
        %565 = vmatprep.subr.mxu0 0.0
        %566 = vmatpush1.msra.mxu0 0.0
        %567 = vmatprep.subr.mxu0 0.0
        %568 = vmatpush1.msra.mxu0 0.0
        %569 = vmatprep.subr.mxu0 0.0
        %570 = vmatpush1.msra.mxu0 0.0
        %571 = vmatprep.subr.mxu0 0.0
        %572 = vmatpush1.msra.mxu0 0.0
        %573 = vmatprep.subr.mxu0 0.0
        %574 = vmatpush1.msra.mxu0 0.0
        %575 = vmatprep.subr.mxu0 0.0
        %576 = vmatpush1.msra.mxu0 0.0
        %577 = vmatprep.subr.mxu0 0.0
        %578 = vmatpush1.msra.mxu0 0.0
        %579 = vmatprep.subr.mxu0 0.0
        %580 = vmatpush1.msra.mxu0 0.0
        %581 = vmatprep.subr.mxu0 0.0
        %582 = vmatpush1.msra.mxu0 0.0
        %583 = vmatprep.subr.mxu0 0.0
        %584 = vmatpush1.msra.mxu0 0.0
        %585 = vmatprep.subr.mxu0 0.0
        %586 = vmatpush1.msra.mxu0 0.0
        %587 = vmatprep.subr.mxu0 0.0
        %588 = vmatpush1.msra.mxu0 0.0
        %589 = vmatprep.subr.mxu0 0.0
        %590 = vmatpush1.msra.mxu0 0.0
        %591 = vmatprep.subr.mxu0 0.0
        %592 = vmatpush1.msra.mxu0 0.0
        %593 = vmatprep.subr.mxu0 0.0
        %594 = vmatpush1.msra.mxu0 0.0
        %595 = vmatprep.subr.mxu0 0.0
        %596 = vmatpush1.msra.mxu0 0.0
        %597 = vmatprep.subr.mxu0 0.0
        %598 = vmatpush1.msra.mxu0 0.0
        %599 = vmatprep.subr.mxu0 0.0
        %600 = vmatpush1.msra.mxu0 0.0
        %601 = vmatprep.subr.mxu0 0.0
        %602 = vmatpush1.msra.mxu0 0.0
        %603 = vmatprep.mubr.f32.mxu0 0.0
        %604 = vmatmul.mubr.f32.gmra.mrb[0].mxu0 %v534
        %v605 = vpop.f32.mrb[0].mxu0
        %v606 = vadd.f32 %v530, %v605
        %v607 = vpop.f32.mrb[0].mxu0
        %608 = vmatprep.mubr.f32.mxu0 0.0
        %609 = vmatmul.mubr.f32.gmra.mrb[0].mxu0 %v537
        %v610 = vpop.f32.mrb[0].mxu0
        %v611 = vadd.f32 %v530, %v610
        %v612 = vpop.f32.mrb[0].mxu0
        %613 = vdwg.mxu0
        %v614 = vld [vmem:[#allocation8] sm:$0xff]
        %v615 = vld [vmem:[#allocation8 + $0x8] sm:$0xff]
        %v616 = vld [vmem:[#allocation8 + $0x10] sm:$0xff]
        %v617 = vld [vmem:[#allocation8 + $0x18] sm:$0xff]
        %v618 = vld [vmem:[%s5] sm:$0x1]
        %v620 = vlaneseq
        %v621 = vshrl.u32 %v620, 7
        %v622 = vsub.s32 0, %v621
        %v623 = vrot.slane %v618, %v622
        %v626 = vsel %vm532, %v519, 0
        %v629 = vsel %vm532, %v520, 0
        %631 = vmatprep.subr.mxu0 0.0
        %632 = vmatpush1.msra.mxu0 %v614
        %633 = vmatprep.subr.mxu0 0.0
        %634 = vmatpush1.msra.mxu0 %v615
        %635 = vmatprep.subr.mxu0 0.0
        %636 = vmatpush1.msra.mxu0 %v616
        %637 = vmatprep.subr.mxu0 0.0
        %638 = vmatpush1.msra.mxu0 %v617
        %639 = vmatprep.subr.mxu0 0.0
        %640 = vmatpush1.msra.mxu0 0.0
        %641 = vmatprep.subr.mxu0 0.0
        %642 = vmatpush1.msra.mxu0 0.0
        %643 = vmatprep.subr.mxu0 0.0
        %644 = vmatpush1.msra.mxu0 0.0
        %645 = vmatprep.subr.mxu0 0.0
        %646 = vmatpush1.msra.mxu0 0.0
        %647 = vmatprep.subr.mxu0 0.0
        %648 = vmatpush1.msra.mxu0 0.0
        %649 = vmatprep.subr.mxu0 0.0
        %650 = vmatpush1.msra.mxu0 0.0
        %651 = vmatprep.subr.mxu0 0.0
        %652 = vmatpush1.msra.mxu0 0.0
        %653 = vmatprep.subr.mxu0 0.0
        %654 = vmatpush1.msra.mxu0 0.0
        %655 = vmatprep.subr.mxu0 0.0
        %656 = vmatpush1.msra.mxu0 0.0
        %657 = vmatprep.subr.mxu0 0.0
        %658 = vmatpush1.msra.mxu0 0.0
        %659 = vmatprep.subr.mxu0 0.0
        %660 = vmatpush1.msra.mxu0 0.0
        %661 = vmatprep.subr.mxu0 0.0
        %662 = vmatpush1.msra.mxu0 0.0
        %663 = vmatprep.subr.mxu0 0.0
        %664 = vmatpush1.msra.mxu0 0.0
        %665 = vmatprep.subr.mxu0 0.0
        %666 = vmatpush1.msra.mxu0 0.0
        %667 = vmatprep.subr.mxu0 0.0
        %668 = vmatpush1.msra.mxu0 0.0
        %669 = vmatprep.subr.mxu0 0.0
        %670 = vmatpush1.msra.mxu0 0.0
        %671 = vmatprep.subr.mxu0 0.0
        %672 = vmatpush1.msra.mxu0 0.0
        %673 = vmatprep.subr.mxu0 0.0
        %674 = vmatpush1.msra.mxu0 0.0
        %675 = vmatprep.subr.mxu0 0.0
        %676 = vmatpush1.msra.mxu0 0.0
        %677 = vmatprep.subr.mxu0 0.0
        %678 = vmatpush1.msra.mxu0 0.0
        %679 = vmatprep.subr.mxu0 0.0
        %680 = vmatpush1.msra.mxu0 0.0
        %681 = vmatprep.subr.mxu0 0.0
        %682 = vmatpush1.msra.mxu0 0.0
        %683 = vmatprep.subr.mxu0 0.0
        %684 = vmatpush1.msra.mxu0 0.0
        %685 = vmatprep.subr.mxu0 0.0
        %686 = vmatpush1.msra.mxu0 0.0
        %687 = vmatprep.subr.mxu0 0.0
        %688 = vmatpush1.msra.mxu0 0.0
        %689 = vmatprep.subr.mxu0 0.0
        %690 = vmatpush1.msra.mxu0 0.0
        %691 = vmatprep.subr.mxu0 0.0
        %692 = vmatpush1.msra.mxu0 0.0
        %693 = vmatprep.subr.mxu0 0.0
        %694 = vmatpush1.msra.mxu0 0.0
        %695 = vmatprep.mubr.f32.mxu0 0.0
        %696 = vmatmul.mubr.f32.gmra.mrb[0].mxu0 %v626
        %v697 = vpop.f32.mrb[0].mxu0
        %v698 = vadd.f32 %v623, %v697
        %v699 = vpop.f32.mrb[0].mxu0
        %700 = vmatprep.mubr.f32.mxu0 0.0
        %701 = vmatmul.mubr.f32.gmra.mrb[0].mxu0 %v629
        %v702 = vpop.f32.mrb[0].mxu0
        %v703 = vadd.f32 %v623, %v702
        %v704 = vpop.f32.mrb[0].mxu0
        %705 = vdwg.mxu0
        %v707 = vsel %vm532, %v606, 0
        %v710 = vsel %vm532, %v698, 0
        %712 = vmatprep.subr.mxu0 0.0
        %713 = vmatpush1.xpose.msra.mxu0 %v710
        %714 = vmatprep.subr.mxu0 0.0
        %715 = vmatpush1.xpose.msra.mxu0 0.0
        %716 = vmatprep.subr.mxu0 0.0
        %717 = vmatpush1.xpose.msra.mxu0 0.0
        %718 = vmatprep.subr.mxu0 0.0
        %719 = vmatpush1.xpose.msra.mxu0 0.0
        %720 = vmatprep.subr.mxu0 0.0
        %721 = vmatpush1.xpose.msra.mxu0 0.0
        %722 = vmatprep.subr.mxu0 0.0
        %723 = vmatpush1.xpose.msra.mxu0 0.0
        %724 = vmatprep.subr.mxu0 0.0
        %725 = vmatpush1.xpose.msra.mxu0 0.0
        %726 = vmatprep.subr.mxu0 0.0
        %727 = vmatpush1.xpose.msra.mxu0 0.0
        %728 = vmatprep.subr.mxu0 0.0
        %729 = vmatpush1.xpose.msra.mxu0 0.0
        %730 = vmatprep.subr.mxu0 0.0
        %731 = vmatpush1.xpose.msra.mxu0 0.0
        %732 = vmatprep.subr.mxu0 0.0
        %733 = vmatpush1.xpose.msra.mxu0 0.0
        %734 = vmatprep.subr.mxu0 0.0
        %735 = vmatpush1.xpose.msra.mxu0 0.0
        %736 = vmatprep.subr.mxu0 0.0
        %737 = vmatpush1.xpose.msra.mxu0 0.0
        %738 = vmatprep.subr.mxu0 0.0
        %739 = vmatpush1.xpose.msra.mxu0 0.0
        %740 = vmatprep.subr.mxu0 0.0
        %741 = vmatpush1.xpose.msra.mxu0 0.0
        %742 = vmatprep.subr.mxu0 0.0
        %743 = vmatpush1.xpose.msra.mxu0 0.0
        %744 = vmatprep.subr.mxu0 0.0
        %745 = vmatpush1.xpose.msra.mxu0 0.0
        %746 = vmatprep.subr.mxu0 0.0
        %747 = vmatpush1.xpose.msra.mxu0 0.0
        %748 = vmatprep.subr.mxu0 0.0
        %749 = vmatpush1.xpose.msra.mxu0 0.0
        %750 = vmatprep.subr.mxu0 0.0
        %751 = vmatpush1.xpose.msra.mxu0 0.0
        %752 = vmatprep.subr.mxu0 0.0
        %753 = vmatpush1.xpose.msra.mxu0 0.0
        %754 = vmatprep.subr.mxu0 0.0
        %755 = vmatpush1.xpose.msra.mxu0 0.0
        %756 = vmatprep.subr.mxu0 0.0
        %757 = vmatpush1.xpose.msra.mxu0 0.0
        %758 = vmatprep.subr.mxu0 0.0
        %759 = vmatpush1.xpose.msra.mxu0 0.0
        %760 = vmatprep.subr.mxu0 0.0
        %761 = vmatpush1.xpose.msra.mxu0 0.0
        %762 = vmatprep.subr.mxu0 0.0
        %763 = vmatpush1.xpose.msra.mxu0 0.0
        %764 = vmatprep.subr.mxu0 0.0
        %765 = vmatpush1.xpose.msra.mxu0 0.0
        %766 = vmatprep.subr.mxu0 0.0
        %767 = vmatpush1.xpose.msra.mxu0 0.0
        %768 = vmatprep.subr.mxu0 0.0
        %769 = vmatpush1.xpose.msra.mxu0 0.0
        %770 = vmatprep.subr.mxu0 0.0
        %771 = vmatpush1.xpose.msra.mxu0 0.0
        %772 = vmatprep.subr.mxu0 0.0
        %773 = vmatpush1.xpose.msra.mxu0 0.0
        %774 = vmatprep.subr.mxu0 0.0
        %775 = vmatpush1.xpose.msra.mxu0 0.0
        %776 = vmatprep.mubr.f32.mxu0 0.0
        %777 = vmatmul.mubr.f32.gmra.mrb[0].mxu0 %v707
        %v778 = vpop.f32.mrb[0].mxu0
        %v779 = vadd.f32 0.0, %v778
        %v780 = vpop.f32.mrb[0].mxu0
        %781 = vdwg.mxu0
        %v783 = vsel %vm532, %v611, 0
        %v786 = vsel %vm532, %v703, 0
        %788 = vmatprep.subr.mxu0 0.0
        %789 = vmatpush1.xpose.msra.mxu0 %v786
        %790 = vmatprep.subr.mxu0 0.0
        %791 = vmatpush1.xpose.msra.mxu0 0.0
        %792 = vmatprep.subr.mxu0 0.0
        %793 = vmatpush1.xpose.msra.mxu0 0.0
        %794 = vmatprep.subr.mxu0 0.0
        %795 = vmatpush1.xpose.msra.mxu0 0.0
        %796 = vmatprep.subr.mxu0 0.0
        %797 = vmatpush1.xpose.msra.mxu0 0.0
        %798 = vmatprep.subr.mxu0 0.0
        %799 = vmatpush1.xpose.msra.mxu0 0.0
        %800 = vmatprep.subr.mxu0 0.0
        %801 = vmatpush1.xpose.msra.mxu0 0.0
        %802 = vmatprep.subr.mxu0 0.0
        %803 = vmatpush1.xpose.msra.mxu0 0.0
        %804 = vmatprep.subr.mxu0 0.0
        %805 = vmatpush1.xpose.msra.mxu0 0.0
        %806 = vmatprep.subr.mxu0 0.0
        %807 = vmatpush1.xpose.msra.mxu0 0.0
        %808 = vmatprep.subr.mxu0 0.0
        %809 = vmatpush1.xpose.msra.mxu0 0.0
        %810 = vmatprep.subr.mxu0 0.0
        %811 = vmatpush1.xpose.msra.mxu0 0.0
        %812 = vmatprep.subr.mxu0 0.0
        %813 = vmatpush1.xpose.msra.mxu0 0.0
        %814 = vmatprep.subr.mxu0 0.0
        %815 = vmatpush1.xpose.msra.mxu0 0.0
        %816 = vmatprep.subr.mxu0 0.0
        %817 = vmatpush1.xpose.msra.mxu0 0.0
        %818 = vmatprep.subr.mxu0 0.0
        %819 = vmatpush1.xpose.msra.mxu0 0.0
        %820 = vmatprep.subr.mxu0 0.0
        %821 = vmatpush1.xpose.msra.mxu0 0.0
        %822 = vmatprep.subr.mxu0 0.0
        %823 = vmatpush1.xpose.msra.mxu0 0.0
        %824 = vmatprep.subr.mxu0 0.0
        %825 = vmatpush1.xpose.msra.mxu0 0.0
        %826 = vmatprep.subr.mxu0 0.0
        %827 = vmatpush1.xpose.msra.mxu0 0.0
        %828 = vmatprep.subr.mxu0 0.0
        %829 = vmatpush1.xpose.msra.mxu0 0.0
        %830 = vmatprep.subr.mxu0 0.0
        %831 = vmatpush1.xpose.msra.mxu0 0.0
        %832 = vmatprep.subr.mxu0 0.0
        %833 = vmatpush1.xpose.msra.mxu0 0.0
        %834 = vmatprep.subr.mxu0 0.0
        %835 = vmatpush1.xpose.msra.mxu0 0.0
        %836 = vmatprep.subr.mxu0 0.0
        %837 = vmatpush1.xpose.msra.mxu0 0.0
        %838 = vmatprep.subr.mxu0 0.0
        %839 = vmatpush1.xpose.msra.mxu0 0.0
        %840 = vmatprep.subr.mxu0 0.0
        %841 = vmatpush1.xpose.msra.mxu0 0.0
        %842 = vmatprep.subr.mxu0 0.0
        %843 = vmatpush1.xpose.msra.mxu0 0.0
        %844 = vmatprep.subr.mxu0 0.0
        %845 = vmatpush1.xpose.msra.mxu0 0.0
        %846 = vmatprep.subr.mxu0 0.0
        %847 = vmatpush1.xpose.msra.mxu0 0.0
        %848 = vmatprep.subr.mxu0 0.0
        %849 = vmatpush1.xpose.msra.mxu0 0.0
        %850 = vmatprep.subr.mxu0 0.0
        %851 = vmatpush1.xpose.msra.mxu0 0.0
        %852 = vmatprep.mubr.f32.mxu0 0.0
        %853 = vmatmul.mubr.f32.gmra.mrb[0].mxu0 %v783
        %v854 = vpop.f32.mrb[0].mxu0
        %v855 = vadd.f32 0.0, %v854
        %v856 = vpop.f32.mrb[0].mxu0
        %857 = vdwg.mxu0
        %vm858 = vcmask 64512
        %v859 = vsel %vm858, %v779, -inf
        %860 = vmax.xlane.f32.xlu0 %v859
        %v861 = vpop.xlane.xlu0 %860
        %v862 = vsel %vm858, %v855, -inf
        %863 = vmax.xlane.f32.xlu0 %v862
        %v864 = vpop.xlane.xlu0 %863
        %v865 = vsub.f32 %v779, %v861
        %v866 = vsub.f32 %v855, %v864
        %v867 = vmul.f32 %v865, 1.442695
        %v868 = vpow.pop %v867
        %v869 = vmul.f32 %v866, 1.442695
        %v870 = vpow.pop %v869
        %v871 = vsel %vm858, %v868, 0.0
        %872 = vadd.xlane.f32.xlu0 %v871
        %v873 = vpop.xlane.xlu0 %872
        %v874 = vsel %vm858, %v870, 0.0
        %875 = vadd.xlane.f32.xlu0 %v874
        %v876 = vpop.xlane.xlu0 %875
        %v877 = vrcp.pop %v873
        %v878 = vrcp.pop %v876
        %v879 = vmul.f32 %v868, %v877
        %v880 = vmul.f32 %v870, %v878
        %881 = vrot.lane.b32.xlu0 %v698, 96
        %v882 = vpop.permute.xlu0 %881
        %v885 = vsel %vm858, %v879, 0
        %887 = vmatprep.subr.mxu0 0.0
        %888 = vmatpush1.msra.mxu0 %v882
        %889 = vmatprep.subr.mxu0 0.0
        %890 = vmatpush1.msra.mxu0 0.0
        %891 = vmatprep.subr.mxu0 0.0
        %892 = vmatpush1.msra.mxu0 0.0
        %893 = vmatprep.subr.mxu0 0.0
        %894 = vmatpush1.msra.mxu0 0.0
        %895 = vmatprep.subr.mxu0 0.0
        %896 = vmatpush1.msra.mxu0 0.0
        %897 = vmatprep.subr.mxu0 0.0
        %898 = vmatpush1.msra.mxu0 0.0
        %899 = vmatprep.subr.mxu0 0.0
        %900 = vmatpush1.msra.mxu0 0.0
        %901 = vmatprep.subr.mxu0 0.0
        %902 = vmatpush1.msra.mxu0 0.0
        %903 = vmatprep.subr.mxu0 0.0
        %904 = vmatpush1.msra.mxu0 0.0
        %905 = vmatprep.subr.mxu0 0.0
        %906 = vmatpush1.msra.mxu0 0.0
        %907 = vmatprep.subr.mxu0 0.0
        %908 = vmatpush1.msra.mxu0 0.0
        %909 = vmatprep.subr.mxu0 0.0
        %910 = vmatpush1.msra.mxu0 0.0
        %911 = vmatprep.subr.mxu0 0.0
        %912 = vmatpush1.msra.mxu0 0.0
        %913 = vmatprep.subr.mxu0 0.0
        %914 = vmatpush1.msra.mxu0 0.0
        %915 = vmatprep.subr.mxu0 0.0
        %916 = vmatpush1.msra.mxu0 0.0
        %917 = vmatprep.subr.mxu0 0.0
        %918 = vmatpush1.msra.mxu0 0.0
        %919 = vmatprep.subr.mxu0 0.0
        %920 = vmatpush1.msra.mxu0 0.0
        %921 = vmatprep.subr.mxu0 0.0
        %922 = vmatpush1.msra.mxu0 0.0
        %923 = vmatprep.subr.mxu0 0.0
        %924 = vmatpush1.msra.mxu0 0.0
        %925 = vmatprep.subr.mxu0 0.0
        %926 = vmatpush1.msra.mxu0 0.0
        %927 = vmatprep.subr.mxu0 0.0
        %928 = vmatpush1.msra.mxu0 0.0
        %929 = vmatprep.subr.mxu0 0.0
        %930 = vmatpush1.msra.mxu0 0.0
        %931 = vmatprep.subr.mxu0 0.0
        %932 = vmatpush1.msra.mxu0 0.0
        %933 = vmatprep.subr.mxu0 0.0
        %934 = vmatpush1.msra.mxu0 0.0
        %935 = vmatprep.subr.mxu0 0.0
        %936 = vmatpush1.msra.mxu0 0.0
        %937 = vmatprep.subr.mxu0 0.0
        %938 = vmatpush1.msra.mxu0 0.0
        %939 = vmatprep.subr.mxu0 0.0
        %940 = vmatpush1.msra.mxu0 0.0
        %941 = vmatprep.subr.mxu0 0.0
        %942 = vmatpush1.msra.mxu0 0.0
        %943 = vmatprep.subr.mxu0 0.0
        %944 = vmatpush1.msra.mxu0 0.0
        %945 = vmatprep.subr.mxu0 0.0
        %946 = vmatpush1.msra.mxu0 0.0
        %947 = vmatprep.subr.mxu0 0.0
        %948 = vmatpush1.msra.mxu0 0.0
        %949 = vmatprep.subr.mxu0 0.0
        %950 = vmatpush1.msra.mxu0 0.0
        %951 = vmatprep.mubr.f32.mxu0 0.0
        %952 = vmatmul.mubr.f32.gmra.mrb[0].mxu0 %v885
        %v953 = vpop.f32.mrb[0].mxu0
        %v954 = vadd.f32 0.0, %v953
        %v955 = vpop.f32.mrb[0].mxu0
        %956 = vdwg.mxu0
        %957 = vrot.lane.b32.xlu0 %v703, 96
        %v958 = vpop.permute.xlu0 %957
        %v961 = vsel %vm858, %v880, 0
        %963 = vmatprep.subr.mxu0 0.0
        %964 = vmatpush1.msra.mxu0 %v958
        %965 = vmatprep.subr.mxu0 0.0
        %966 = vmatpush1.msra.mxu0 0.0
        %967 = vmatprep.subr.mxu0 0.0
        %968 = vmatpush1.msra.mxu0 0.0
        %969 = vmatprep.subr.mxu0 0.0
        %970 = vmatpush1.msra.mxu0 0.0
        %971 = vmatprep.subr.mxu0 0.0
        %972 = vmatpush1.msra.mxu0 0.0
        %973 = vmatprep.subr.mxu0 0.0
        %974 = vmatpush1.msra.mxu0 0.0
        %975 = vmatprep.subr.mxu0 0.0
        %976 = vmatpush1.msra.mxu0 0.0
        %977 = vmatprep.subr.mxu0 0.0
        %978 = vmatpush1.msra.mxu0 0.0
        %979 = vmatprep.subr.mxu0 0.0
        %980 = vmatpush1.msra.mxu0 0.0
        %981 = vmatprep.subr.mxu0 0.0
        %982 = vmatpush1.msra.mxu0 0.0
        %983 = vmatprep.subr.mxu0 0.0
        %984 = vmatpush1.msra.mxu0 0.0
        %985 = vmatprep.subr.mxu0 0.0
        %986 = vmatpush1.msra.mxu0 0.0
        %987 = vmatprep.subr.mxu0 0.0
        %988 = vmatpush1.msra.mxu0 0.0
        %989 = vmatprep.subr.mxu0 0.0
        %990 = vmatpush1.msra.mxu0 0.0
        %991 = vmatprep.subr.mxu0 0.0
        %992 = vmatpush1.msra.mxu0 0.0
        %993 = vmatprep.subr.mxu0 0.0
        %994 = vmatpush1.msra.mxu0 0.0
        %995 = vmatprep.subr.mxu0 0.0
        %996 = vmatpush1.msra.mxu0 0.0
        %997 = vmatprep.subr.mxu0 0.0
        %998 = vmatpush1.msra.mxu0 0.0
        %999 = vmatprep.subr.mxu0 0.0
        %1000 = vmatpush1.msra.mxu0 0.0
        %1001 = vmatprep.subr.mxu0 0.0
        %1002 = vmatpush1.msra.mxu0 0.0
        %1003 = vmatprep.subr.mxu0 0.0
        %1004 = vmatpush1.msra.mxu0 0.0
        %1005 = vmatprep.subr.mxu0 0.0
        %1006 = vmatpush1.msra.mxu0 0.0
        %1007 = vmatprep.subr.mxu0 0.0
        %1008 = vmatpush1.msra.mxu0 0.0
        %1009 = vmatprep.subr.mxu0 0.0
        %1010 = vmatpush1.msra.mxu0 0.0
        %1011 = vmatprep.subr.mxu0 0.0
        %1012 = vmatpush1.msra.mxu0 0.0
        %1013 = vmatprep.subr.mxu0 0.0
        %1014 = vmatpush1.msra.mxu0 0.0
        %1015 = vmatprep.subr.mxu0 0.0
        %1016 = vmatpush1.msra.mxu0 0.0
        %1017 = vmatprep.subr.mxu0 0.0
        %1018 = vmatpush1.msra.mxu0 0.0
        %1019 = vmatprep.subr.mxu0 0.0
        %1020 = vmatpush1.msra.mxu0 0.0
        %1021 = vmatprep.subr.mxu0 0.0
        %1022 = vmatpush1.msra.mxu0 0.0
        %1023 = vmatprep.subr.mxu0 0.0
        %1024 = vmatpush1.msra.mxu0 0.0
        %1025 = vmatprep.subr.mxu0 0.0
        %1026 = vmatpush1.msra.mxu0 0.0
        %1027 = vmatprep.mubr.f32.mxu0 0.0
        %1028 = vmatmul.mubr.f32.gmra.mrb[0].mxu0 %v961
        %v1029 = vpop.f32.mrb[0].mxu0
        %v1030 = vadd.f32 0.0, %v1029
        %v1031 = vpop.f32.mrb[0].mxu0
        %1032 = vdwg.mxu0
        %v1033 = vld [vmem:[#allocation10] sm:$0xff]
        %v1034 = vld [vmem:[#allocation10 + $0x8] sm:$0xff]
        %v1035 = vld [vmem:[#allocation10 + $0x10] sm:$0xff]
        %v1036 = vld [vmem:[#allocation10 + $0x18] sm:$0xff]
        %v1037 = vld [vmem:[%s7] sm:$0x1]
        %v1039 = vlaneseq
        %v1040 = vshrl.u32 %v1039, 7
        %v1041 = vsub.s32 0, %v1040
        %v1042 = vrot.slane %v1037, %v1041
        %v1045 = vsel %vm532, %v954, 0
        %v1048 = vsel %vm532, %v1030, 0
        %1050 = vmatprep.subr.mxu0 0.0
        %1051 = vmatpush1.msra.mxu0 %v1033
        %1052 = vmatprep.subr.mxu0 0.0
        %1053 = vmatpush1.msra.mxu0 %v1034
        %1054 = vmatprep.subr.mxu0 0.0
        %1055 = vmatpush1.msra.mxu0 %v1035
        %1056 = vmatprep.subr.mxu0 0.0
        %1057 = vmatpush1.msra.mxu0 %v1036
        %1058 = vmatprep.subr.mxu0 0.0
        %1059 = vmatpush1.msra.mxu0 0.0
        %1060 = vmatprep.subr.mxu0 0.0
        %1061 = vmatpush1.msra.mxu0 0.0
        %1062 = vmatprep.subr.mxu0 0.0
        %1063 = vmatpush1.msra.mxu0 0.0
        %1064 = vmatprep.subr.mxu0 0.0
        %1065 = vmatpush1.msra.mxu0 0.0
        %1066 = vmatprep.subr.mxu0 0.0
        %1067 = vmatpush1.msra.mxu0 0.0
        %1068 = vmatprep.subr.mxu0 0.0
        %1069 = vmatpush1.msra.mxu0 0.0
        %1070 = vmatprep.subr.mxu0 0.0
        %1071 = vmatpush1.msra.mxu0 0.0
        %1072 = vmatprep.subr.mxu0 0.0
        %1073 = vmatpush1.msra.mxu0 0.0
        %1074 = vmatprep.subr.mxu0 0.0
        %1075 = vmatpush1.msra.mxu0 0.0
        %1076 = vmatprep.subr.mxu0 0.0
        %1077 = vmatpush1.msra.mxu0 0.0
        %1078 = vmatprep.subr.mxu0 0.0
        %1079 = vmatpush1.msra.mxu0 0.0
        %1080 = vmatprep.subr.mxu0 0.0
        %1081 = vmatpush1.msra.mxu0 0.0
        %1082 = vmatprep.subr.mxu0 0.0
        %1083 = vmatpush1.msra.mxu0 0.0
        %1084 = vmatprep.subr.mxu0 0.0
        %1085 = vmatpush1.msra.mxu0 0.0
        %1086 = vmatprep.subr.mxu0 0.0
        %1087 = vmatpush1.msra.mxu0 0.0
        %1088 = vmatprep.subr.mxu0 0.0
        %1089 = vmatpush1.msra.mxu0 0.0
        %1090 = vmatprep.subr.mxu0 0.0
        %1091 = vmatpush1.msra.mxu0 0.0
        %1092 = vmatprep.subr.mxu0 0.0
        %1093 = vmatpush1.msra.mxu0 0.0
        %1094 = vmatprep.subr.mxu0 0.0
        %1095 = vmatpush1.msra.mxu0 0.0
        %1096 = vmatprep.subr.mxu0 0.0
        %1097 = vmatpush1.msra.mxu0 0.0
        %1098 = vmatprep.subr.mxu0 0.0
        %1099 = vmatpush1.msra.mxu0 0.0
        %1100 = vmatprep.subr.mxu0 0.0
        %1101 = vmatpush1.msra.mxu0 0.0
        %1102 = vmatprep.subr.mxu0 0.0
        %1103 = vmatpush1.msra.mxu0 0.0
        %1104 = vmatprep.subr.mxu0 0.0
        %1105 = vmatpush1.msra.mxu0 0.0
        %1106 = vmatprep.subr.mxu0 0.0
        %1107 = vmatpush1.msra.mxu0 0.0
        %1108 = vmatprep.subr.mxu0 0.0
        %1109 = vmatpush1.msra.mxu0 0.0
        %1110 = vmatprep.subr.mxu0 0.0
        %1111 = vmatpush1.msra.mxu0 0.0
        %1112 = vmatprep.subr.mxu0 0.0
        %1113 = vmatpush1.msra.mxu0 0.0
        %1114 = vmatprep.mubr.f32.mxu0 0.0
        %1115 = vmatmul.mubr.f32.gmra.mrb[0].mxu0 %v1045
        %v1116 = vpop.f32.mrb[0].mxu0
        %v1117 = vadd.f32 %v1042, %v1116
        %v1118 = vpop.f32.mrb[0].mxu0
        %1119 = vmatprep.mubr.f32.mxu0 0.0
        %1120 = vmatmul.mubr.f32.gmra.mrb[0].mxu0 %v1048
        %v1121 = vpop.f32.mrb[0].mxu0
        %v1122 = vadd.f32 %v1042, %v1121
        %v1123 = vpop.f32.mrb[0].mxu0
        %1124 = vdwg.mxu0
        %v1125 = vadd.f32 %v517, %v1117
        %v1126 = vadd.f32 %v518, %v1122
        %v1127 = vld [vmem:[#allocation11] sm:$0xff]
        %v1128 = vld [vmem:[#allocation11 + $0x8] sm:$0xff]
        %v1129 = vld [vmem:[#allocation11 + $0x10] sm:$0xff]
        %v1130 = vld [vmem:[#allocation11 + $0x18] sm:$0xff]
        %v1131 = vld [vmem:[%s9] sm:$0x1]
        %v1133 = vlaneseq
        %v1134 = vshrl.u32 %v1133, 7
        %v1135 = vsub.s32 0, %v1134
        %v1136 = vrot.slane %v1131, %v1135
        %v1139 = vsel %vm532, %v1125, 0
        %v1142 = vsel %vm532, %v1126, 0
        %1144 = vmatprep.subr.mxu0 0.0
        %1145 = vmatpush1.msra.mxu0 %v1127
        %1146 = vmatprep.subr.mxu0 0.0
        %1147 = vmatpush1.msra.mxu0 %v1128
        %1148 = vmatprep.subr.mxu0 0.0
        %1149 = vmatpush1.msra.mxu0 %v1129
        %1150 = vmatprep.subr.mxu0 0.0
        %1151 = vmatpush1.msra.mxu0 %v1130
        %1152 = vmatprep.subr.mxu0 0.0
        %1153 = vmatpush1.msra.mxu0 0.0
        %1154 = vmatprep.subr.mxu0 0.0
        %1155 = vmatpush1.msra.mxu0 0.0
        %1156 = vmatprep.subr.mxu0 0.0
        %1157 = vmatpush1.msra.mxu0 0.0
        %1158 = vmatprep.subr.mxu0 0.0
        %1159 = vmatpush1.msra.mxu0 0.0
        %1160 = vmatprep.subr.mxu0 0.0
        %1161 = vmatpush1.msra.mxu0 0.0
        %1162 = vmatprep.subr.mxu0 0.0
        %1163 = vmatpush1.msra.mxu0 0.0
        %1164 = vmatprep.subr.mxu0 0.0
        %1165 = vmatpush1.msra.mxu0 0.0
        %1166 = vmatprep.subr.mxu0 0.0
        %1167 = vmatpush1.msra.mxu0 0.0
        %1168 = vmatprep.subr.mxu0 0.0
        %1169 = vmatpush1.msra.mxu0 0.0
        %1170 = vmatprep.subr.mxu0 0.0
        %1171 = vmatpush1.msra.mxu0 0.0
        %1172 = vmatprep.subr.mxu0 0.0
        %1173 = vmatpush1.msra.mxu0 0.0
        %1174 = vmatprep.subr.mxu0 0.0
        %1175 = vmatpush1.msra.mxu0 0.0
        %1176 = vmatprep.subr.mxu0 0.0
        %1177 = vmatpush1.msra.mxu0 0.0
        %1178 = vmatprep.subr.mxu0 0.0
        %1179 = vmatpush1.msra.mxu0 0.0
        %1180 = vmatprep.subr.mxu0 0.0
        %1181 = vmatpush1.msra.mxu0 0.0
        %1182 = vmatprep.subr.mxu0 0.0
        %1183 = vmatpush1.msra.mxu0 0.0
        %1184 = vmatprep.subr.mxu0 0.0
        %1185 = vmatpush1.msra.mxu0 0.0
        %1186 = vmatprep.subr.mxu0 0.0
        %1187 = vmatpush1.msra.mxu0 0.0
        %1188 = vmatprep.subr.mxu0 0.0
        %1189 = vmatpush1.msra.mxu0 0.0
        %1190 = vmatprep.subr.mxu0 0.0
        %1191 = vmatpush1.msra.mxu0 0.0
        %1192 = vmatprep.subr.mxu0 0.0
        %1193 = vmatpush1.msra.mxu0 0.0
        %1194 = vmatprep.subr.mxu0 0.0
        %1195 = vmatpush1.msra.mxu0 0.0
        %1196 = vmatprep.subr.mxu0 0.0
        %1197 = vmatpush1.msra.mxu0 0.0
        %1198 = vmatprep.subr.mxu0 0.0
        %1199 = vmatpush1.msra.mxu0 0.0
        %1200 = vmatprep.subr.mxu0 0.0
        %1201 = vmatpush1.msra.mxu0 0.0
        %1202 = vmatprep.subr.mxu0 0.0
        %1203 = vmatpush1.msra.mxu0 0.0
        %1204 = vmatprep.subr.mxu0 0.0
        %1205 = vmatpush1.msra.mxu0 0.0
        %1206 = vmatprep.subr.mxu0 0.0
        %1207 = vmatpush1.msra.mxu0 0.0
        %1208 = vmatprep.mubr.f32.mxu0 0.0
        %1209 = vmatmul.mubr.f32.gmra.mrb[0].mxu0 %v1139
        %v1210 = vpop.f32.mrb[0].mxu0
        %v1211 = vadd.f32 %v1136, %v1210
        %v1212 = vpop.f32.mrb[0].mxu0
        %1213 = vmatprep.mubr.f32.mxu0 0.0
        %1214 = vmatmul.mubr.f32.gmra.mrb[0].mxu0 %v1142
        %v1215 = vpop.f32.mrb[0].mxu0
        %v1216 = vadd.f32 %v1136, %v1215
        %v1217 = vpop.f32.mrb[0].mxu0
        %1218 = vdwg.mxu0
        %1219 = vst [vmem:[%s513] sm:$0xff] %v1211
        %1220 = vst [vmem:[%s513 + $0x8] sm:$0xff] %v1216
        %v1221 = vrot.slane %v1126, 7
        %vm1222 = vcmask 1041409
        %v1223 = vsel %vm1222, %v1221, %v1125
        %vm1225 = vcmask 254976
        %1226 = vst.msk [vmem:[%s506] sm:$0x3] %vm1225, %v1223
        %s1227 = sand.u32 %s265, 1
        %s1228 = scalar_lea.sflag [#allocation4], %s1227
        %s1229 = sand.u32 %s265, 1
        %s1230 = smul.addr %s1229, 2
        %s1231 = scalar_lea.vmem [#allocation13], %s1230
        %s1232 = sand.u32 %s291, 1
        %s1233 = scalar_lea.sflag [#allocation15], %s1232
        %s1234 = sand.u32 %s291, 1
        %s1235 = smul.addr %s1234, 16
        %s1236 = scalar_lea.vmem [#allocation14], %s1235
        // Predicated region
        $region85: #{tpu_custom_call.1} parent=59 // pred_check
          %p1237 = pneg %p275
        $region86: #{tpu_custom_call.1} parent=59 // pred_check_branch
          %1239 = sbr.rel (%p1237) target = $region88
        $region87: #{tpu_custom_call.1} parent=59 // pred_region
          %s1241 = ssub.s32 32, 32
          %1242 = vsyncadd %s1228, %s1241
          %s1243 = smul.addr %s37, 32
          %s1244 = scalar_lea.hbm %s10, %s1243
          %s1246 = sshll.u32 %s1231, 4
          %s1247 = int_to_ptr.vmem [resolvable:$true] %s1246
          %1249 = dma.vmem_to_hbm [thread:$0]  %s1247, 32, %s1244, %s1228
        $region88: #{tpu_custom_call.1} parent=59 // pred_fallthru
          _
        // Predicated region
        $region89: #{tpu_custom_call.1} parent=59 // pred_check
          %p1250 = pneg %p301
        $region90: #{tpu_custom_call.1} parent=59 // pred_check_branch
          %1252 = sbr.rel (%p1250) target = $region92
        $region91: #{tpu_custom_call.1} parent=59 // pred_region
          %s1253 = smul.u32 2, %s37
          %s1255 = ssub.s32 256, 256
          %1256 = vsyncadd %s1233, %s1255
          %s1257 = smul.addr %s1253, 128
          %s1258 = scalar_lea.hbm %s11, %s1257
          %s1259 = sshll.u32 %s1236, 4
          %s1260 = int_to_ptr.vmem [resolvable:$true] %s1259
          %1265 = dma.vmem_to_hbm [thread:$0]  %s1260, 256, %s1258, %s1233, 128, 128, 8
        $region92: #{tpu_custom_call.1} parent=59 // pred_fallthru
          _
      $region60: #{tpu_custom_call.1} parent=5 // pred_fallthru
        _
      %p1266 = scmp.le.s32.totalorder 2, %s32
      // Predicated region
      $region93: #{tpu_custom_call.1} parent=5 // pred_check
        %p1267 = pneg %p1266
      $region94: #{tpu_custom_call.1} parent=5 // pred_check_branch
        %1269 = sbr.rel (%p1267) target = $region96
      $region95: #{tpu_custom_call.1} parent=5 // pred_region
        %s1270 = ssub.s32 %s32, 2
        // Predicated region
        $region97: #{tpu_custom_call.1} parent=95 // pred_check
          %p1271 = pneg %p281
        $region98: #{tpu_custom_call.1} parent=95 // pred_check_branch
          %1273 = sbr.rel (%p1271) target = $region100
        $region99: #{tpu_custom_call.1} parent=95 // pred_region
          %s1274 = sand.u32 %s266, 1
          %s1275 = scalar_lea.sflag [#allocation4], %s1274
          %s1276 = sand.u32 %s266, 1
          %s1277 = smul.addr %s1276, 2
          %s1278 = scalar_lea.vmem [#allocation13], %s1277
          %1279 = dma.done %s1275, 32
        $region100: #{tpu_custom_call.1} parent=95 // pred_fallthru
          _
        // Predicated region
        $region101: #{tpu_custom_call.1} parent=95 // pred_check
          %p1280 = pneg %p307
        $region102: #{tpu_custom_call.1} parent=95 // pred_check_branch
          %1282 = sbr.rel (%p1280) target = $region104
        $region103: #{tpu_custom_call.1} parent=95 // pred_region
          %s1283 = sand.u32 %s292, 1
          %s1284 = scalar_lea.sflag [#allocation15], %s1283
          %s1285 = sand.u32 %s292, 1
          %s1286 = smul.addr %s1285, 16
          %s1287 = scalar_lea.vmem [#allocation14], %s1286
          %1288 = dma.done %s1284, 256
        $region104: #{tpu_custom_call.1} parent=95 // pred_fallthru
          _
      $region96: #{tpu_custom_call.1} parent=5 // pred_fallthru
        _
    $region6: #{tpu_custom_call.1} parent=1 // loop_footer
      %s36 = sadd.s32 1, %s32
    $region7: #{tpu_custom_call.1} parent=1 // loop_footer_branch
      %31 = sbr.rel target = $region3
    $region8: #{tpu_custom_call.1} parent=1 // loop_exit
      _
    %1289 = vsyncpa [#allocation3], 1
    %s1290 = scalar_lea.sflag [#allocation3], 1
    %1291 = vsyncpa %s1290, 1
    %1292 = vsyncpa [#allocation6], 1
    %s1293 = scalar_lea.sflag [#allocation6], 1
    %1294 = vsyncpa %s1293, 1
    %1295 = vsyncpa [#allocation9], 1
    %1296 = vsyncpa [#allocation12], 1
    %1297 = vsyncpa [#allocation4], 1
    %s1298 = scalar_lea.sflag [#allocation4], 1
    %1299 = vsyncpa %s1298, 1
    %1300 = vsyncpa [#allocation15], 1
    %s1301 = scalar_lea.sflag [#allocation15], 1
    %1302 = vsyncpa %s1301, 1

// kernel: tpu_custom_call.1
$region0: #{tpu_custom_call.1}
  #allocation0 [shape = 'u32[]', space=smem, size = 0x4, offset = 0x4, fixed_abs, tag = 'smem constant byte address 0x4 - core index']
  #allocation1 [shape = 'u32[144,128]{1,0:T(1,128)}', space=vmem, size = 0x12000, scoped, tag = 'internal scratch']
  %s0 = inlined_call_operand.hbm [shape: f32[4,8,32], index: 0, kind: input, shape index: {}]
  %s1 = inlined_call_operand.hbm [shape: f32[4,8,32], index: 1, kind: input, shape index: {}]
  %s2 = inlined_call_operand.hbm [shape: f32[32,32], index: 2, kind: input, shape index: {}]
  %s3 = inlined_call_operand.vmem [shape: f32[1,32], index: 3, kind: input, shape index: {}]
  %s4 = inlined_call_operand.hbm [shape: f32[32,64], index: 4, kind: input, shape index: {}]
  %s5 = inlined_call_operand.vmem [shape: f32[1,64], index: 5, kind: input, shape index: {}]
  %s6 = inlined_call_operand.hbm [shape: f32[32,32], index: 6, kind: input, shape index: {}]
  %s7 = inlined_call_operand.vmem [shape: f32[1,32], index: 7, kind: input, shape index: {}]
  %s8 = inlined_call_operand.hbm [shape: f32[32,128], index: 8, kind: input, shape index: {}]
  %s9 = inlined_call_operand.vmem [shape: f32[1,128], index: 9, kind: input, shape index: {}]
  %s10 = inlined_call_operand.hbm [shape: f32[2,2,32], index: 10, kind: output, shape index: {0}]
  %s11 = inlined_call_operand.hbm [shape: f32[4,8,128], index: 11, kind: output, shape index: {1}]
  %12 = xla_tuple %s10, %s11
  %s13 = sld [smem:[#allocation0]]
  $region105: #{tpu_custom_call.1} parent=0
    _
  %s15 = ssub.s32 1, %s13
  %s16 = scalar_select 0, %s15, %s13
  $region1: #{tpu_custom_call.1} parent=0
    #allocation2 [shape = 'u8[16384]{0}', space=vmem, size = 0x4000, scoped, tag = 'input window, operand 0']
    #allocation3 [shape = 's32[2]{0}', space=sflag, size = 0x8, scoped, tag = 'scoped memory for tpu_custom_call.1']
    #allocation4 [shape = 's32[2]{0}', space=sflag, size = 0x8, scoped, tag = 'scoped memory for tpu_custom_call.1']
    #allocation5 [shape = 'u8[16384]{0}', space=vmem, size = 0x4000, scoped, tag = 'input window, operand 1']
    #allocation6 [shape = 's32[2]{0}', space=sflag, size = 0x8, scoped, tag = 'scoped memory for tpu_custom_call.1']
    #allocation7 [shape = 'u8[16384]{0}', space=vmem, size = 0x4000, scoped, tag = 'input window, operand 2, single buffered']
    #allocation8 [shape = 'u8[16384]{0}', space=vmem, size = 0x4000, scoped, tag = 'input window, operand 4, single buffered']
    #allocation9 [shape = 's32[1]{0}', space=sflag, size = 0x4, scoped, tag = 'scoped memory for tpu_custom_call.1']
    #allocation10 [shape = 'u8[16384]{0}', space=vmem, size = 0x4000, scoped, tag = 'input window, operand 6, single buffered']
    #allocation11 [shape = 'u8[16384]{0}', space=vmem, size = 0x4000, scoped, tag = 'input window, operand 8, single buffered']
    #allocation12 [shape = 's32[1]{0}', space=sflag, size = 0x4, scoped, tag = 'scoped memory for tpu_custom_call.1']
    #allocation13 [shape = 'u8[2048]{0}', space=vmem, size = 0x800, scoped, tag = 'output window, operand 0']
    #allocation14 [shape = 'u8[16384]{0}', space=vmem, size = 0x4000, scoped, tag = 'output window, operand 1']
    #allocation15 [shape = 's32[2]{0}', space=sflag, size = 0x8, scoped, tag = 'scoped memory for tpu_custom_call.1']
    %17 = vsyncpa [#allocation3], 0
    %s18 = scalar_lea.sflag [#allocation3], 1
    %19 = vsyncpa %s18, 0
    %20 = vsyncpa [#allocation6], 0
    %s21 = scalar_lea.sflag [#allocation6], 1
    %22 = vsyncpa %s21, 0
    %23 = vsyncpa [#allocation9], 0
    %24 = vsyncpa [#allocation12], 0
    %25 = vsyncpa [#allocation4], 0
    %s26 = scalar_lea.sflag [#allocation4], 1
    %27 = vsyncpa %s26, 0
    %28 = vsyncpa [#allocation15], 0
    %s29 = scalar_lea.sflag [#allocation15], 1
    %30 = vsyncpa %s29, 0
    loop: start=0, step=1, limit=4
    $region2: #{tpu_custom_call.1} parent=1 // loop_pre_header
      _
    $region3: #{tpu_custom_call.1} parent=1 // loop_header
      %s32 = sphi 0, %s36
      %p33 = scmp.ge.s32.totalorder %s32, 4
      %s42 = sphi 0, %s44
      %s45 = sphi 0, %s42
      %s46 = sphi 0, %s45
      %s62 = sphi 0, %s46
      %s68 = sphi 0, %s70
      %s71 = sphi 0, %s68
      %s72 = sphi 0, %s71
      %s88 = sphi 0, %s72
      %s92 = sphi 0, %s92
      %s94 = sphi 0, %s92
      %s95 = sphi 0, %s94
      %s109 = sphi 0, %s95
      %s113 = sphi 0, %s113
      %s115 = sphi 0, %s113
      %s116 = sphi 0, %s115
      %s130 = sphi 0, %s116
      %s134 = sphi 0, %s134
      %s136 = sphi 0, %s134
      %s137 = sphi 0, %s136
      %s151 = sphi 0, %s137
      %s155 = sphi 0, %s155
      %s157 = sphi 0, %s155
      %s158 = sphi 0, %s157
      %s172 = sphi 0, %s158
      %s176 = sphi 0, %s176
      %s178 = sphi 0, %s176
      %s179 = sphi 0, %s178
      %s193 = sphi 0, %s179
      %s197 = sphi 0, %s197
      %s199 = sphi 0, %s197
      %s200 = sphi 0, %s199
      %s214 = sphi 0, %s200
      %s218 = sphi 0, %s218
      %s220 = sphi 0, %s218
      %s221 = sphi 0, %s220
      %s235 = sphi 0, %s221
      %s239 = sphi 0, %s239
      %s241 = sphi 0, %s239
      %s242 = sphi 0, %s241
      %s256 = sphi 0, %s242
      %s262 = sphi 0, %s264
      %s265 = sphi 0, %s262
      %s266 = sphi 0, %s265
      %s282 = sphi 0, %s266
      %s288 = sphi 0, %s290
      %s291 = sphi 0, %s288
      %s292 = sphi 0, %s291
      %s308 = sphi 0, %s292
    $region4: #{tpu_custom_call.1} parent=1 // loop_header_branch
      %35 = sbr.rel (%p33) target = $region8
    $region5: #{tpu_custom_call.1} parent=1 // loop_body
      %s37 = ssub.s32 %s32, 1
      %s38 = ssub.s32 %s32, 2
      %s39 = sadd.s32 %s32, 1
      %s40 = ssub.s32 %s32, %s39
      %p41 = scmp.eq.s32.totalorder %s40, 0
      %s43 = sadd.s32 %s42, 1
      %s44 = scalar_select %p41, %s42, %s43
      %p47 = pneg %p41
      %p48 = scmp.eq.s32.totalorder %s32, 1
      %p49 = por %p47, %p48
      %p50 = scmp.ne.s32.totalorder %s42, %s45
      %p51 = scmp.eq.s32.totalorder %s32, 0
      %p52 = por %p50, %p51
      %p53 = scmp.ne.s32.totalorder %s42, %s45
      %p54 = scmp.eq.s32.totalorder %s37, 1
      %p55 = por %p53, %p54
      %p56 = scmp.ne.s32.totalorder %s45, %s46
      %p57 = scmp.eq.s32.totalorder %s37, 0
      %p58 = por %p56, %p57
      %p59 = scmp.ne.s32.totalorder %s45, %s46
      %p60 = scmp.eq.s32.totalorder %s38, 1
      %p61 = por %p59, %p60
      %p63 = scmp.ne.s32.totalorder %s46, %s62
      %p64 = scmp.eq.s32.totalorder %s38, 0
      %p65 = por %p63, %p64
      %s66 = ssub.s32 %s32, %s39
      %p67 = scmp.eq.s32.totalorder %s66, 0
      %s69 = sadd.s32 %s68, 1
      %s70 = scalar_select %p67, %s68, %s69
      %p73 = pneg %p67
      %p74 = scmp.eq.s32.totalorder %s32, 1
      %p75 = por %p73, %p74
      %p76 = scmp.ne.s32.totalorder %s68, %s71
      %p77 = scmp.eq.s32.totalorder %s32, 0
      %p78 = por %p76, %p77
      %p79 = scmp.ne.s32.totalorder %s68, %s71
      %p80 = scmp.eq.s32.totalorder %s37, 1
      %p81 = por %p79, %p80
      %p82 = scmp.ne.s32.totalorder %s71, %s72
      %p83 = scmp.eq.s32.totalorder %s37, 0
      %p84 = por %p82, %p83
      %p85 = scmp.ne.s32.totalorder %s71, %s72
      %p86 = scmp.eq.s32.totalorder %s38, 1
      %p87 = por %p85, %p86
      %p89 = scmp.ne.s32.totalorder %s72, %s88
      %p90 = scmp.eq.s32.totalorder %s38, 0
      %p91 = por %p89, %p90
      %s93 = sadd.s32 %s92, 1
      %p96 = scmp.eq.s32.totalorder %s32, 1
      %p97 = scmp.ne.s32.totalorder %s92, %s94
      %p98 = scmp.eq.s32.totalorder %s32, 0
      %p99 = por %p97, %p98
      %p100 = scmp.ne.s32.totalorder %s92, %s94
      %p101 = scmp.eq.s32.totalorder %s37, 1
      %p102 = por %p100, %p101
      %p103 = scmp.ne.s32.totalorder %s94, %s95
      %p104 = scmp.eq.s32.totalorder %s37, 0
      %p105 = por %p103, %p104
      %p106 = scmp.ne.s32.totalorder %s94, %s95
      %p107 = scmp.eq.s32.totalorder %s38, 1
      %p108 = por %p106, %p107
      %p110 = scmp.ne.s32.totalorder %s95, %s109
      %p111 = scmp.eq.s32.totalorder %s38, 0
      %p112 = por %p110, %p111
      %s114 = sadd.s32 %s113, 1
      %p117 = scmp.eq.s32.totalorder %s32, 1
      %p118 = scmp.ne.s32.totalorder %s113, %s115
      %p119 = scmp.eq.s32.totalorder %s32, 0
      %p120 = por %p118, %p119
      %p121 = scmp.ne.s32.totalorder %s113, %s115
      %p122 = scmp.eq.s32.totalorder %s37, 1
      %p123 = por %p121, %p122
      %p124 = scmp.ne.s32.totalorder %s115, %s116
      %p125 = scmp.eq.s32.totalorder %s37, 0
      %p126 = por %p124, %p125
      %p127 = scmp.ne.s32.totalorder %s115, %s116
      %p128 = scmp.eq.s32.totalorder %s38, 1
      %p129 = por %p127, %p128
      %p131 = scmp.ne.s32.totalorder %s116, %s130
      %p132 = scmp.eq.s32.totalorder %s38, 0
      %p133 = por %p131, %p132
      %s135 = sadd.s32 %s134, 1
      %p138 = scmp.eq.s32.totalorder %s32, 1
      %p139 = scmp.ne.s32.totalorder %s134, %s136
      %p140 = scmp.eq.s32.totalorder %s32, 0
      %p141 = por %p139, %p140
      %p142 = scmp.ne.s32.totalorder %s134, %s136
      %p143 = scmp.eq.s32.totalorder %s37, 1
      %p144 = por %p142, %p143
      %p145 = scmp.ne.s32.totalorder %s136, %s137
      %p146 = scmp.eq.s32.totalorder %s37, 0
      %p147 = por %p145, %p146
      %p148 = scmp.ne.s32.totalorder %s136, %s137
      %p149 = scmp.eq.s32.totalorder %s38, 1
      %p150 = por %p148, %p149
      %p152 = scmp.ne.s32.totalorder %s137, %s151
      %p153 = scmp.eq.s32.totalorder %s38, 0
      %p154 = por %p152, %p153
      %s156 = sadd.s32 %s155, 1
      %p159 = scmp.eq.s32.totalorder %s32, 1
      %p160 = scmp.ne.s32.totalorder %s155, %s157
      %p161 = scmp.eq.s32.totalorder %s32, 0
      %p162 = por %p160, %p161
      %p163 = scmp.ne.s32.totalorder %s155, %s157
      %p164 = scmp.eq.s32.totalorder %s37, 1
      %p165 = por %p163, %p164
      %p166 = scmp.ne.s32.totalorder %s157, %s158
      %p167 = scmp.eq.s32.totalorder %s37, 0
      %p168 = por %p166, %p167
      %p169 = scmp.ne.s32.totalorder %s157, %s158
      %p170 = scmp.eq.s32.totalorder %s38, 1
      %p171 = por %p169, %p170
      %p173 = scmp.ne.s32.totalorder %s158, %s172
      %p174 = scmp.eq.s32.totalorder %s38, 0
      %p175 = por %p173, %p174
      %s177 = sadd.s32 %s176, 1
      %p180 = scmp.eq.s32.totalorder %s32, 1
      %p181 = scmp.ne.s32.totalorder %s176, %s178
      %p182 = scmp.eq.s32.totalorder %s32, 0
      %p183 = por %p181, %p182
      %p184 = scmp.ne.s32.totalorder %s176, %s178
      %p185 = scmp.eq.s32.totalorder %s37, 1
      %p186 = por %p184, %p185
      %p187 = scmp.ne.s32.totalorder %s178, %s179
      %p188 = scmp.eq.s32.totalorder %s37, 0
      %p189 = por %p187, %p188
      %p190 = scmp.ne.s32.totalorder %s178, %s179
      %p191 = scmp.eq.s32.totalorder %s38, 1
      %p192 = por %p190, %p191
      %p194 = scmp.ne.s32.totalorder %s179, %s193
      %p195 = scmp.eq.s32.totalorder %s38, 0
      %p196 = por %p194, %p195
      %s198 = sadd.s32 %s197, 1
      %p201 = scmp.eq.s32.totalorder %s32, 1
      %p202 = scmp.ne.s32.totalorder %s197, %s199
      %p203 = scmp.eq.s32.totalorder %s32, 0
      %p204 = por %p202, %p203
      %p205 = scmp.ne.s32.totalorder %s197, %s199
      %p206 = scmp.eq.s32.totalorder %s37, 1
      %p207 = por %p205, %p206
      %p208 = scmp.ne.s32.totalorder %s199, %s200
      %p209 = scmp.eq.s32.totalorder %s37, 0
      %p210 = por %p208, %p209
      %p211 = scmp.ne.s32.totalorder %s199, %s200
      %p212 = scmp.eq.s32.totalorder %s38, 1
      %p213 = por %p211, %p212
      %p215 = scmp.ne.s32.totalorder %s200, %s214
      %p216 = scmp.eq.s32.totalorder %s38, 0
      %p217 = por %p215, %p216
      %s219 = sadd.s32 %s218, 1
      %p222 = scmp.eq.s32.totalorder %s32, 1
      %p223 = scmp.ne.s32.totalorder %s218, %s220
      %p224 = scmp.eq.s32.totalorder %s32, 0
      %p225 = por %p223, %p224
      %p226 = scmp.ne.s32.totalorder %s218, %s220
      %p227 = scmp.eq.s32.totalorder %s37, 1
      %p228 = por %p226, %p227
      %p229 = scmp.ne.s32.totalorder %s220, %s221
      %p230 = scmp.eq.s32.totalorder %s37, 0
      %p231 = por %p229, %p230
      %p232 = scmp.ne.s32.totalorder %s220, %s221
      %p233 = scmp.eq.s32.totalorder %s38, 1
      %p234 = por %p232, %p233
      %p236 = scmp.ne.s32.totalorder %s221, %s235
      %p237 = scmp.eq.s32.totalorder %s38, 0
      %p238 = por %p236, %p237
      %s240 = sadd.s32 %s239, 1
      %p243 = scmp.eq.s32.totalorder %s32, 1
      %p244 = scmp.ne.s32.totalorder %s239, %s241
      %p245 = scmp.eq.s32.totalorder %s32, 0
      %p246 = por %p244, %p245
      %p247 = scmp.ne.s32.totalorder %s239, %s241
      %p248 = scmp.eq.s32.totalorder %s37, 1
      %p249 = por %p247, %p248
      %p250 = scmp.ne.s32.totalorder %s241, %s242
      %p251 = scmp.eq.s32.totalorder %s37, 0
      %p252 = por %p250, %p251
      %p253 = scmp.ne.s32.totalorder %s241, %s242
      %p254 = scmp.eq.s32.totalorder %s38, 1
      %p255 = por %p253, %p254
      %p257 = scmp.ne.s32.totalorder %s242, %s256
      %p258 = scmp.eq.s32.totalorder %s38, 0
      %p259 = por %p257, %p258
      %s260 = ssub.s32 %s32, %s39
      %p261 = scmp.eq.s32.totalorder %s260, 0
      %s263 = sadd.s32 %s262, 1
      %s264 = scalar_select %p261, %s262, %s263
      %p267 = pneg %p261
      %p268 = scmp.eq.s32.totalorder %s32, 1
      %p269 = por %p267, %p268
      %p270 = scmp.ne.s32.totalorder %s262, %s265
      %p271 = scmp.eq.s32.totalorder %s32, 0
      %p272 = por %p270, %p271
      %p273 = scmp.ne.s32.totalorder %s262, %s265
      %p274 = scmp.eq.s32.totalorder %s37, 1
      %p275 = por %p273, %p274
      %p276 = scmp.ne.s32.totalorder %s265, %s266
      %p277 = scmp.eq.s32.totalorder %s37, 0
      %p278 = por %p276, %p277
      %p279 = scmp.ne.s32.totalorder %s265, %s266
      %p280 = scmp.eq.s32.totalorder %s38, 1
      %p281 = por %p279, %p280
      %p283 = scmp.ne.s32.totalorder %s266, %s282
      %p284 = scmp.eq.s32.totalorder %s38, 0
      %p285 = por %p283, %p284
      %s286 = ssub.s32 %s32, %s39
      %p287 = scmp.eq.s32.totalorder %s286, 0
      %s289 = sadd.s32 %s288, 1
      %s290 = scalar_select %p287, %s288, %s289
      %p293 = pneg %p287
      %p294 = scmp.eq.s32.totalorder %s32, 1
      %p295 = por %p293, %p294
      %p296 = scmp.ne.s32.totalorder %s288, %s291
      %p297 = scmp.eq.s32.totalorder %s32, 0
      %p298 = por %p296, %p297
      %p299 = scmp.ne.s32.totalorder %s288, %s291
      %p300 = scmp.eq.s32.totalorder %s37, 1
      %p301 = por %p299, %p300
      %p302 = scmp.ne.s32.totalorder %s291, %s292
      %p303 = scmp.eq.s32.totalorder %s37, 0
      %p304 = por %p302, %p303
      %p305 = scmp.ne.s32.totalorder %s291, %s292
      %p306 = scmp.eq.s32.totalorder %s38, 1
      %p307 = por %p305, %p306
      %p309 = scmp.ne.s32.totalorder %s292, %s308
      %p310 = scmp.eq.s32.totalorder %s38, 0
      %p311 = por %p309, %p310
      %p312 = scmp.le.s32.totalorder 1, %s32
      %p313 = scmp.lt.s32.totalorder %s32, 3
      %p314 = pnand %p312, %p313
      %p315 = pneg %p314
      // Predicated region
      $region9: #{tpu_custom_call.1} parent=5 // pred_check
        _
      $region10: #{tpu_custom_call.1} parent=5 // pred_check_branch
        %317 = sbr.rel (%p314) target = $region12
      $region11: #{tpu_custom_call.1} parent=5 // pred_region
        %s318 = ssub.s32 %s32, 1
        // Predicated region
        $region13: #{tpu_custom_call.1} parent=11 // pred_check
          %p319 = pneg %p105
        $region14: #{tpu_custom_call.1} parent=11 // pred_check_branch
          %321 = sbr.rel (%p319) target = $region16
        $region15: #{tpu_custom_call.1} parent=11 // pred_region
          %s323 = ssub.s32 512, 512
          %324 = vsyncadd [#allocation6], %s323
          %s325 = sshll.u32 [#allocation7], 4
          %s326 = int_to_ptr.vmem [resolvable:$true] %s325
          %331 = dma.hbm_to_vmem [thread:$0]  %s2, 512, %s326, [#allocation6], 128, 128, 8
        $region16: #{tpu_custom_call.1} parent=11 // pred_fallthru
          _
        // Predicated region
        $region17: #{tpu_custom_call.1} parent=11 // pred_check
          %p332 = pneg %p126
        $region18: #{tpu_custom_call.1} parent=11 // pred_check_branch
          %334 = sbr.rel (%p332) target = $region20
        $region19: #{tpu_custom_call.1} parent=11 // pred_region
          _
        $region20: #{tpu_custom_call.1} parent=11 // pred_fallthru
          _
        // Predicated region
        $region21: #{tpu_custom_call.1} parent=11 // pred_check
          %p335 = pneg %p147
        $region22: #{tpu_custom_call.1} parent=11 // pred_check_branch
          %337 = sbr.rel (%p335) target = $region24
        $region23: #{tpu_custom_call.1} parent=11 // pred_region
          %s339 = ssub.s32 512, 512
          %340 = vsyncadd [#allocation9], %s339
          %s341 = sshll.u32 [#allocation8], 4
          %s342 = int_to_ptr.vmem [resolvable:$true] %s341
          %347 = dma.hbm_to_vmem [thread:$0]  %s4, 512, %s342, [#allocation9], 128, 128, 8
        $region24: #{tpu_custom_call.1} parent=11 // pred_fallthru
          _
        // Predicated region
        $region25: #{tpu_custom_call.1} parent=11 // pred_check
          %p348 = pneg %p168
        $region26: #{tpu_custom_call.1} parent=11 // pred_check_branch
          %350 = sbr.rel (%p348) target = $region28
        $region27: #{tpu_custom_call.1} parent=11 // pred_region
          _
        $region28: #{tpu_custom_call.1} parent=11 // pred_fallthru
          _
        // Predicated region
        $region29: #{tpu_custom_call.1} parent=11 // pred_check
          %p351 = pneg %p189
        $region30: #{tpu_custom_call.1} parent=11 // pred_check_branch
          %353 = sbr.rel (%p351) target = $region32
        $region31: #{tpu_custom_call.1} parent=11 // pred_region
          %s355 = ssub.s32 512, 512
          %356 = vsyncadd [#allocation9], %s355
          %s357 = sshll.u32 [#allocation10], 4
          %s358 = int_to_ptr.vmem [resolvable:$true] %s357
          %363 = dma.hbm_to_vmem [thread:$0]  %s6, 512, %s358, [#allocation9], 128, 128, 8
        $region32: #{tpu_custom_call.1} parent=11 // pred_fallthru
          _
        // Predicated region
        $region33: #{tpu_custom_call.1} parent=11 // pred_check
          %p364 = pneg %p210
        $region34: #{tpu_custom_call.1} parent=11 // pred_check_branch
          %366 = sbr.rel (%p364) target = $region36
        $region35: #{tpu_custom_call.1} parent=11 // pred_region
          _
        $region36: #{tpu_custom_call.1} parent=11 // pred_fallthru
          _
        // Predicated region
        $region37: #{tpu_custom_call.1} parent=11 // pred_check
          %p367 = pneg %p231
        $region38: #{tpu_custom_call.1} parent=11 // pred_check_branch
          %369 = sbr.rel (%p367) target = $region40
        $region39: #{tpu_custom_call.1} parent=11 // pred_region
          %s371 = ssub.s32 512, 512
          %372 = vsyncadd [#allocation12], %s371
          %s373 = sshll.u32 [#allocation11], 4
          %s374 = int_to_ptr.vmem [resolvable:$true] %s373
          %379 = dma.hbm_to_vmem [thread:$0]  %s8, 512, %s374, [#allocation12], 128, 128, 8
        $region40: #{tpu_custom_call.1} parent=11 // pred_fallthru
          _
        // Predicated region
        $region41: #{tpu_custom_call.1} parent=11 // pred_check
          %p380 = pneg %p252
        $region42: #{tpu_custom_call.1} parent=11 // pred_check_branch
          %382 = sbr.rel (%p380) target = $region44
        $region43: #{tpu_custom_call.1} parent=11 // pred_region
          _
        $region44: #{tpu_custom_call.1} parent=11 // pred_fallthru
          _
      $region12: #{tpu_custom_call.1} parent=5 // pred_fallthru
        _
      %p383 = scmp.lt.s32.totalorder %s32, 2
      // Predicated region
      $region45: #{tpu_custom_call.1} parent=5 // pred_check
        %p384 = pneg %p383
      $region46: #{tpu_custom_call.1} parent=5 // pred_check_branch
        %386 = sbr.rel (%p384) target = $region48
      $region47: #{tpu_custom_call.1} parent=5 // pred_region
        // Predicated region
        $region49: #{tpu_custom_call.1} parent=47 // pred_check
          %p387 = pneg %p52
        $region50: #{tpu_custom_call.1} parent=47 // pred_check_branch
          %389 = sbr.rel (%p387) target = $region52
        $region51: #{tpu_custom_call.1} parent=47 // pred_region
          %s390 = sand.u32 %s42, 1
          %s391 = scalar_lea.sflag [#allocation3], %s390
          %s392 = sand.u32 %s42, 1
          %s393 = smul.addr %s392, 16
          %s394 = scalar_lea.vmem [#allocation2], %s393
          %s395 = smul.u32 2, %s32
          %s397 = ssub.s32 256, 256
          %398 = vsyncadd %s391, %s397
          %s399 = smul.addr %s395, 128
          %s400 = scalar_lea.hbm %s0, %s399
          %s401 = sshll.u32 %s394, 4
          %s402 = int_to_ptr.vmem [resolvable:$true] %s401
          %407 = dma.hbm_to_vmem [thread:$0]  %s400, 256, %s402, %s391, 128, 128, 8
        $region52: #{tpu_custom_call.1} parent=47 // pred_fallthru
          _
        // Predicated region
        $region53: #{tpu_custom_call.1} parent=47 // pred_check
          %p408 = pneg %p78
        $region54: #{tpu_custom_call.1} parent=47 // pred_check_branch
          %410 = sbr.rel (%p408) target = $region56
        $region55: #{tpu_custom_call.1} parent=47 // pred_region
          %s411 = sand.u32 %s32, 1
          %s412 = scalar_lea.sflag [#allocation6], %s411
          %s413 = sand.u32 %s68, 1
          %s414 = smul.addr %s413, 16
          %s415 = scalar_lea.vmem [#allocation5], %s414
          %s416 = smul.u32 2, %s32
          %s418 = ssub.s32 256, 256
          %419 = vsyncadd %s412, %s418
          %s420 = smul.addr %s416, 128
          %s421 = scalar_lea.hbm %s1, %s420
          %s422 = sshll.u32 %s415, 4
          %s423 = int_to_ptr.vmem [resolvable:$true] %s422
          %428 = dma.hbm_to_vmem [thread:$0]  %s421, 256, %s423, %s412, 128, 128, 8
        $region56: #{tpu_custom_call.1} parent=47 // pred_fallthru
          _
      $region48: #{tpu_custom_call.1} parent=5 // pred_fallthru
        _
      %p429 = scmp.le.s32.totalorder 1, %s32
      %p430 = scmp.lt.s32.totalorder %s32, 3
      %p431 = pnand %p429, %p430
      %p432 = pneg %p431
      // Predicated region
      $region57: #{tpu_custom_call.1} parent=5 // pred_check
        _
      $region58: #{tpu_custom_call.1} parent=5 // pred_check_branch
        %434 = sbr.rel (%p431) target = $region60
      $region59: #{tpu_custom_call.1} parent=5 // pred_region
        %s435 = ssub.s32 %s32, 1
        %s436 = sand.u32 %s45, 1
        %s437 = scalar_lea.sflag [#allocation3], %s436
        %s438 = sand.u32 %s45, 1
        %s439 = smul.addr %s438, 16
        %s440 = scalar_lea.vmem [#allocation2], %s439
        // Predicated region
        $region61: #{tpu_custom_call.1} parent=59 // pred_check
          %p441 = pneg %p58
        $region62: #{tpu_custom_call.1} parent=59 // pred_check_branch
          %443 = sbr.rel (%p441) target = $region64
        $region63: #{tpu_custom_call.1} parent=59 // pred_region
          %444 = dma.done %s437, 256
        $region64: #{tpu_custom_call.1} parent=59 // pred_fallthru
          _
        %s445 = sand.u32 %s37, 1
        %s446 = scalar_lea.sflag [#allocation6], %s445
        %s447 = sand.u32 %s71, 1
        %s448 = smul.addr %s447, 16
        %s449 = scalar_lea.vmem [#allocation5], %s448
        // Predicated region
        $region65: #{tpu_custom_call.1} parent=59 // pred_check
          %p450 = pneg %p84
        $region66: #{tpu_custom_call.1} parent=59 // pred_check_branch
          %452 = sbr.rel (%p450) target = $region68
        $region67: #{tpu_custom_call.1} parent=59 // pred_region
          %453 = dma.done %s446, 256
        $region68: #{tpu_custom_call.1} parent=59 // pred_fallthru
          _
        // Predicated region
        $region69: #{tpu_custom_call.1} parent=59 // pred_check
          %p454 = pneg %p105
        $region70: #{tpu_custom_call.1} parent=59 // pred_check_branch
          %456 = sbr.rel (%p454) target = $region72
        $region71: #{tpu_custom_call.1} parent=59 // pred_region
          %457 = dma.done [#allocation6], 512
        $region72: #{tpu_custom_call.1} parent=59 // pred_fallthru
          _
        // Predicated region
        $region73: #{tpu_custom_call.1} parent=59 // pred_check
          %p458 = pneg %p147
        $region74: #{tpu_custom_call.1} parent=59 // pred_check_branch
          %460 = sbr.rel (%p458) target = $region76
        $region75: #{tpu_custom_call.1} parent=59 // pred_region
          %461 = dma.done [#allocation9], 512
        $region76: #{tpu_custom_call.1} parent=59 // pred_fallthru
          _
        // Predicated region
        $region77: #{tpu_custom_call.1} parent=59 // pred_check
          %p462 = pneg %p189
        $region78: #{tpu_custom_call.1} parent=59 // pred_check_branch
          %464 = sbr.rel (%p462) target = $region80
        $region79: #{tpu_custom_call.1} parent=59 // pred_region
          %465 = dma.done [#allocation9], 512
        $region80: #{tpu_custom_call.1} parent=59 // pred_fallthru
          _
        // Predicated region
        $region81: #{tpu_custom_call.1} parent=59 // pred_check
          %p466 = pneg %p231
        $region82: #{tpu_custom_call.1} parent=59 // pred_check_branch
          %468 = sbr.rel (%p466) target = $region84
        $region83: #{tpu_custom_call.1} parent=59 // pred_region
          %469 = dma.done [#allocation12], 512
        $region84: #{tpu_custom_call.1} parent=59 // pred_fallthru
          _
        %s470 = sand.u32 %s45, 1
        %s471 = scalar_lea.sflag [#allocation3], %s470
        %s472 = sand.u32 %s45, 1
        %s473 = smul.addr %s472, 16
        %s474 = scalar_lea.vmem [#allocation2], %s473
        %p475 = pneg %p58
        %p476 = pneg %p55
        %s477 = sand.u32 %s37, 1
        %s478 = scalar_lea.sflag [#allocation6], %s477
        %s479 = sand.u32 %s71, 1
        %s480 = smul.addr %s479, 16
        %s481 = scalar_lea.vmem [#allocation5], %s480
        %p482 = pneg %p84
        %p483 = pneg %p81
        %p484 = pneg %p105
        %p485 = pneg %p102
        %p486 = pneg %p126
        %p487 = pneg %p123
        %p488 = pneg %p147
        %p489 = pneg %p144
        %p490 = pneg %p168
        %p491 = pneg %p165
        %p492 = pneg %p189
        %p493 = pneg %p186
        %p494 = pneg %p210
        %p495 = pneg %p207
        %p496 = pneg %p231
        %p497 = pneg %p228
        %p498 = pneg %p252
        %p499 = pneg %p249
        %p500 = pneg %p278
        %p501 = pneg %p275
        %s502 = sand.u32 %s265, 1
        %s503 = scalar_lea.sflag [#allocation4], %s502
        %s504 = sand.u32 %s265, 1
        %s505 = smul.addr %s504, 2
        %s506 = scalar_lea.vmem [#allocation13], %s505
        %p507 = pneg %p304
        %p508 = pneg %p301
        %s509 = sand.u32 %s291, 1
        %s510 = scalar_lea.sflag [#allocation15], %s509
        %s511 = sand.u32 %s291, 1
        %s512 = smul.addr %s511, 16
        %s513 = scalar_lea.vmem [#allocation14], %s512
        %s514 = smul.u32 2, %s37
        %s515 = smul.u32 2, %s37
        %s516 = smul.u32 2, %s37
        %v517 = vld [vmem:[%s440] sm:$0xff]
        %v518 = vld [vmem:[%s440 + $0x8] sm:$0xff]
        %v519 = vld [vmem:[%s449] sm:$0xff]
        %v520 = vld [vmem:[%s449 + $0x8] sm:$0xff]
        %v521 = vld [vmem:[#allocation7] sm:$0xff]
        %v522 = vld [vmem:[#allocation7 + $0x8] sm:$0xff]
        %v523 = vld [vmem:[#allocation7 + $0x10] sm:$0xff]
        %v524 = vld [vmem:[#allocation7 + $0x18] sm:$0xff]
        %v525 = vld [vmem:[%s3] sm:$0x1]
        %v527 = vlaneseq
        %v528 = vshrl.u32 %v527, 7
        %v529 = vsub.s32 0, %v528
        %v530 = vrot.slane %v525, %v529
        %vm532 = vcmask 261120
        %v534 = vsel %vm532, %v517, 0
        %v537 = vsel %vm532, %v518, 0
        %539 = vmatprep.subr.mxu0 0.0
        %540 = vmatpush1.msra.mxu0 %v521
        %541 = vmatprep.subr.mxu0 0.0
        %542 = vmatpush1.msra.mxu0 %v522
        %543 = vmatprep.subr.mxu0 0.0
        %544 = vmatpush1.msra.mxu0 %v523
        %545 = vmatprep.subr.mxu0 0.0
        %546 = vmatpush1.msra.mxu0 %v524
        %547 = vmatprep.subr.mxu0 0.0
        %548 = vmatpush1.msra.mxu0 0.0
        %549 = vmatprep.subr.mxu0 0.0
        %550 = vmatpush1.msra.mxu0 0.0
        %551 = vmatprep.subr.mxu0 0.0
        %552 = vmatpush1.msra.mxu0 0.0
        %553 = vmatprep.subr.mxu0 0.0
        %554 = vmatpush1.msra.mxu0 0.0
        %555 = vmatprep.subr.mxu0 0.0
        %556 = vmatpush1.msra.mxu0 0.0
        %557 = vmatprep.subr.mxu0 0.0
        %558 = vmatpush1.msra.mxu0 0.0
        %559 = vmatprep.subr.mxu0 0.0
        %560 = vmatpush1.msra.mxu0 0.0
        %561 = vmatprep.subr.mxu0 0.0
        %562 = vmatpush1.msra.mxu0 0.0
        %563 = vmatprep.subr.mxu0 0.0
        %564 = vmatpush1.msra.mxu0 0.0
        %565 = vmatprep.subr.mxu0 0.0
        %566 = vmatpush1.msra.mxu0 0.0
        %567 = vmatprep.subr.mxu0 0.0
        %568 = vmatpush1.msra.mxu0 0.0
        %569 = vmatprep.subr.mxu0 0.0
        %570 = vmatpush1.msra.mxu0 0.0
        %571 = vmatprep.subr.mxu0 0.0
        %572 = vmatpush1.msra.mxu0 0.0
        %573 = vmatprep.subr.mxu0 0.0
        %574 = vmatpush1.msra.mxu0 0.0
        %575 = vmatprep.subr.mxu0 0.0
        %576 = vmatpush1.msra.mxu0 0.0
        %577 = vmatprep.subr.mxu0 0.0
        %578 = vmatpush1.msra.mxu0 0.0
        %579 = vmatprep.subr.mxu0 0.0
        %580 = vmatpush1.msra.mxu0 0.0
        %581 = vmatprep.subr.mxu0 0.0
        %582 = vmatpush1.msra.mxu0 0.0
        %583 = vmatprep.subr.mxu0 0.0
        %584 = vmatpush1.msra.mxu0 0.0
        %585 = vmatprep.subr.mxu0 0.0
        %586 = vmatpush1.msra.mxu0 0.0
        %587 = vmatprep.subr.mxu0 0.0
        %588 = vmatpush1.msra.mxu0 0.0
        %589 = vmatprep.subr.mxu0 0.0
        %590 = vmatpush1.msra.mxu0 0.0
        %591 = vmatprep.subr.mxu0 0.0
        %592 = vmatpush1.msra.mxu0 0.0
        %593 = vmatprep.subr.mxu0 0.0
        %594 = vmatpush1.msra.mxu0 0.0
        %595 = vmatprep.subr.mxu0 0.0
        %596 = vmatpush1.msra.mxu0 0.0
        %597 = vmatprep.subr.mxu0 0.0
        %598 = vmatpush1.msra.mxu0 0.0
        %599 = vmatprep.subr.mxu0 0.0
        %600 = vmatpush1.msra.mxu0 0.0
        %601 = vmatprep.subr.mxu0 0.0
        %602 = vmatpush1.msra.mxu0 0.0
        %603 = vmatprep.mubr.f32.mxu0 0.0
        %604 = vmatmul.mubr.f32.gmra.mrb[0].mxu0 %v534
        %v605 = vpop.f32.mrb[0].mxu0
        %v606 = vadd.f32 %v530, %v605
        %v607 = vpop.f32.mrb[0].mxu0
        %608 = vmatprep.mubr.f32.mxu0 0.0
        %609 = vmatmul.mubr.f32.gmra.mrb[0].mxu0 %v537
        %v610 = vpop.f32.mrb[0].mxu0
        %v611 = vadd.f32 %v530, %v610
        %v612 = vpop.f32.mrb[0].mxu0
        %613 = vdwg.mxu0
        %v614 = vld [vmem:[#allocation8] sm:$0xff]
        %v615 = vld [vmem:[#allocation8 + $0x8] sm:$0xff]
        %v616 = vld [vmem:[#allocation8 + $0x10] sm:$0xff]
        %v617 = vld [vmem:[#allocation8 + $0x18] sm:$0xff]
        %v618 = vld [vmem:[%s5] sm:$0x1]
        %v620 = vlaneseq
        %v621 = vshrl.u32 %v620, 7
        %v622 = vsub.s32 0, %v621
        %v623 = vrot.slane %v618, %v622
        %v626 = vsel %vm532, %v519, 0
        %v629 = vsel %vm532, %v520, 0
        %631 = vmatprep.subr.mxu0 0.0
        %632 = vmatpush1.msra.mxu0 %v614
        %633 = vmatprep.subr.mxu0 0.0
        %634 = vmatpush1.msra.mxu0 %v615
        %635 = vmatprep.subr.mxu0 0.0
        %636 = vmatpush1.msra.mxu0 %v616
        %637 = vmatprep.subr.mxu0 0.0
        %638 = vmatpush1.msra.mxu0 %v617
        %639 = vmatprep.subr.mxu0 0.0
        %640 = vmatpush1.msra.mxu0 0.0
        %641 = vmatprep.subr.mxu0 0.0
        %642 = vmatpush1.msra.mxu0 0.0
        %643 = vmatprep.subr.mxu0 0.0
        %644 = vmatpush1.msra.mxu0 0.0
        %645 = vmatprep.subr.mxu0 0.0
        %646 = vmatpush1.msra.mxu0 0.0
        %647 = vmatprep.subr.mxu0 0.0
        %648 = vmatpush1.msra.mxu0 0.0
        %649 = vmatprep.subr.mxu0 0.0
        %650 = vmatpush1.msra.mxu0 0.0
        %651 = vmatprep.subr.mxu0 0.0
        %652 = vmatpush1.msra.mxu0 0.0
        %653 = vmatprep.subr.mxu0 0.0
        %654 = vmatpush1.msra.mxu0 0.0
        %655 = vmatprep.subr.mxu0 0.0
        %656 = vmatpush1.msra.mxu0 0.0
        %657 = vmatprep.subr.mxu0 0.0
        %658 = vmatpush1.msra.mxu0 0.0
        %659 = vmatprep.subr.mxu0 0.0
        %660 = vmatpush1.msra.mxu0 0.0
        %661 = vmatprep.subr.mxu0 0.0
        %662 = vmatpush1.msra.mxu0 0.0
        %663 = vmatprep.subr.mxu0 0.0
        %664 = vmatpush1.msra.mxu0 0.0
        %665 = vmatprep.subr.mxu0 0.0
        %666 = vmatpush1.msra.mxu0 0.0
        %667 = vmatprep.subr.mxu0 0.0
        %668 = vmatpush1.msra.mxu0 0.0
        %669 = vmatprep.subr.mxu0 0.0
        %670 = vmatpush1.msra.mxu0 0.0
        %671 = vmatprep.subr.mxu0 0.0
        %672 = vmatpush1.msra.mxu0 0.0
        %673 = vmatprep.subr.mxu0 0.0
        %674 = vmatpush1.msra.mxu0 0.0
        %675 = vmatprep.subr.mxu0 0.0
        %676 = vmatpush1.msra.mxu0 0.0
        %677 = vmatprep.subr.mxu0 0.0
        %678 = vmatpush1.msra.mxu0 0.0
        %679 = vmatprep.subr.mxu0 0.0
        %680 = vmatpush1.msra.mxu0 0.0
        %681 = vmatprep.subr.mxu0 0.0
        %682 = vmatpush1.msra.mxu0 0.0
        %683 = vmatprep.subr.mxu0 0.0
        %684 = vmatpush1.msra.mxu0 0.0
        %685 = vmatprep.subr.mxu0 0.0
        %686 = vmatpush1.msra.mxu0 0.0
        %687 = vmatprep.subr.mxu0 0.0
        %688 = vmatpush1.msra.mxu0 0.0
        %689 = vmatprep.subr.mxu0 0.0
        %690 = vmatpush1.msra.mxu0 0.0
        %691 = vmatprep.subr.mxu0 0.0
        %692 = vmatpush1.msra.mxu0 0.0
        %693 = vmatprep.subr.mxu0 0.0
        %694 = vmatpush1.msra.mxu0 0.0
        %695 = vmatprep.mubr.f32.mxu0 0.0
        %696 = vmatmul.mubr.f32.gmra.mrb[0].mxu0 %v626
        %v697 = vpop.f32.mrb[0].mxu0
        %v698 = vadd.f32 %v623, %v697
        %v699 = vpop.f32.mrb[0].mxu0
        %700 = vmatprep.mubr.f32.mxu0 0.0
        %701 = vmatmul.mubr.f32.gmra.mrb[0].mxu0 %v629
        %v702 = vpop.f32.mrb[0].mxu0
        %v703 = vadd.f32 %v623, %v702
        %v704 = vpop.f32.mrb[0].mxu0
        %705 = vdwg.mxu0
        %v707 = vsel %vm532, %v606, 0
        %v710 = vsel %vm532, %v698, 0
        %712 = vmatprep.subr.mxu0 0.0
        %713 = vmatpush1.xpose.msra.mxu0 %v710
        %714 = vmatprep.subr.mxu0 0.0
        %715 = vmatpush1.xpose.msra.mxu0 0.0
        %716 = vmatprep.subr.mxu0 0.0
        %717 = vmatpush1.xpose.msra.mxu0 0.0
        %718 = vmatprep.subr.mxu0 0.0
        %719 = vmatpush1.xpose.msra.mxu0 0.0
        %720 = vmatprep.subr.mxu0 0.0
        %721 = vmatpush1.xpose.msra.mxu0 0.0
        %722 = vmatprep.subr.mxu0 0.0
        %723 = vmatpush1.xpose.msra.mxu0 0.0
        %724 = vmatprep.subr.mxu0 0.0
        %725 = vmatpush1.xpose.msra.mxu0 0.0
        %726 = vmatprep.subr.mxu0 0.0
        %727 = vmatpush1.xpose.msra.mxu0 0.0
        %728 = vmatprep.subr.mxu0 0.0
        %729 = vmatpush1.xpose.msra.mxu0 0.0
        %730 = vmatprep.subr.mxu0 0.0
        %731 = vmatpush1.xpose.msra.mxu0 0.0
        %732 = vmatprep.subr.mxu0 0.0
        %733 = vmatpush1.xpose.msra.mxu0 0.0
        %734 = vmatprep.subr.mxu0 0.0
        %735 = vmatpush1.xpose.msra.mxu0 0.0
        %736 = vmatprep.subr.mxu0 0.0
        %737 = vmatpush1.xpose.msra.mxu0 0.0
        %738 = vmatprep.subr.mxu0 0.0
        %739 = vmatpush1.xpose.msra.mxu0 0.0
        %740 = vmatprep.subr.mxu0 0.0
        %741 = vmatpush1.xpose.msra.mxu0 0.0
        %742 = vmatprep.subr.mxu0 0.0
        %743 = vmatpush1.xpose.msra.mxu0 0.0
        %744 = vmatprep.subr.mxu0 0.0
        %745 = vmatpush1.xpose.msra.mxu0 0.0
        %746 = vmatprep.subr.mxu0 0.0
        %747 = vmatpush1.xpose.msra.mxu0 0.0
        %748 = vmatprep.subr.mxu0 0.0
        %749 = vmatpush1.xpose.msra.mxu0 0.0
        %750 = vmatprep.subr.mxu0 0.0
        %751 = vmatpush1.xpose.msra.mxu0 0.0
        %752 = vmatprep.subr.mxu0 0.0
        %753 = vmatpush1.xpose.msra.mxu0 0.0
        %754 = vmatprep.subr.mxu0 0.0
        %755 = vmatpush1.xpose.msra.mxu0 0.0
        %756 = vmatprep.subr.mxu0 0.0
        %757 = vmatpush1.xpose.msra.mxu0 0.0
        %758 = vmatprep.subr.mxu0 0.0
        %759 = vmatpush1.xpose.msra.mxu0 0.0
        %760 = vmatprep.subr.mxu0 0.0
        %761 = vmatpush1.xpose.msra.mxu0 0.0
        %762 = vmatprep.subr.mxu0 0.0
        %763 = vmatpush1.xpose.msra.mxu0 0.0
        %764 = vmatprep.subr.mxu0 0.0
        %765 = vmatpush1.xpose.msra.mxu0 0.0
        %766 = vmatprep.subr.mxu0 0.0
        %767 = vmatpush1.xpose.msra.mxu0 0.0
        %768 = vmatprep.subr.mxu0 0.0
        %769 = vmatpush1.xpose.msra.mxu0 0.0
        %770 = vmatprep.subr.mxu0 0.0
        %771 = vmatpush1.xpose.msra.mxu0 0.0
        %772 = vmatprep.subr.mxu0 0.0
        %773 = vmatpush1.xpose.msra.mxu0 0.0
        %774 = vmatprep.subr.mxu0 0.0
        %775 = vmatpush1.xpose.msra.mxu0 0.0
        %776 = vmatprep.mubr.f32.mxu0 0.0
        %777 = vmatmul.mubr.f32.gmra.mrb[0].mxu0 %v707
        %v778 = vpop.f32.mrb[0].mxu0
        %v779 = vadd.f32 0.0, %v778
        %v780 = vpop.f32.mrb[0].mxu0
        %781 = vdwg.mxu0
        %v783 = vsel %vm532, %v611, 0
        %v786 = vsel %vm532, %v703, 0
        %788 = vmatprep.subr.mxu0 0.0
        %789 = vmatpush1.xpose.msra.mxu0 %v786
        %790 = vmatprep.subr.mxu0 0.0
        %791 = vmatpush1.xpose.msra.mxu0 0.0
        %792 = vmatprep.subr.mxu0 0.0
        %793 = vmatpush1.xpose.msra.mxu0 0.0
        %794 = vmatprep.subr.mxu0 0.0
        %795 = vmatpush1.xpose.msra.mxu0 0.0
        %796 = vmatprep.subr.mxu0 0.0
        %797 = vmatpush1.xpose.msra.mxu0 0.0
        %798 = vmatprep.subr.mxu0 0.0
        %799 = vmatpush1.xpose.msra.mxu0 0.0
        %800 = vmatprep.subr.mxu0 0.0
        %801 = vmatpush1.xpose.msra.mxu0 0.0
        %802 = vmatprep.subr.mxu0 0.0
        %803 = vmatpush1.xpose.msra.mxu0 0.0
        %804 = vmatprep.subr.mxu0 0.0
        %805 = vmatpush1.xpose.msra.mxu0 0.0
        %806 = vmatprep.subr.mxu0 0.0
        %807 = vmatpush1.xpose.msra.mxu0 0.0
        %808 = vmatprep.subr.mxu0 0.0
        %809 = vmatpush1.xpose.msra.mxu0 0.0
        %810 = vmatprep.subr.mxu0 0.0
        %811 = vmatpush1.xpose.msra.mxu0 0.0
        %812 = vmatprep.subr.mxu0 0.0
        %813 = vmatpush1.xpose.msra.mxu0 0.0
        %814 = vmatprep.subr.mxu0 0.0
        %815 = vmatpush1.xpose.msra.mxu0 0.0
        %816 = vmatprep.subr.mxu0 0.0
        %817 = vmatpush1.xpose.msra.mxu0 0.0
        %818 = vmatprep.subr.mxu0 0.0
        %819 = vmatpush1.xpose.msra.mxu0 0.0
        %820 = vmatprep.subr.mxu0 0.0
        %821 = vmatpush1.xpose.msra.mxu0 0.0
        %822 = vmatprep.subr.mxu0 0.0
        %823 = vmatpush1.xpose.msra.mxu0 0.0
        %824 = vmatprep.subr.mxu0 0.0
        %825 = vmatpush1.xpose.msra.mxu0 0.0
        %826 = vmatprep.subr.mxu0 0.0
        %827 = vmatpush1.xpose.msra.mxu0 0.0
        %828 = vmatprep.subr.mxu0 0.0
        %829 = vmatpush1.xpose.msra.mxu0 0.0
        %830 = vmatprep.subr.mxu0 0.0
        %831 = vmatpush1.xpose.msra.mxu0 0.0
        %832 = vmatprep.subr.mxu0 0.0
        %833 = vmatpush1.xpose.msra.mxu0 0.0
        %834 = vmatprep.subr.mxu0 0.0
        %835 = vmatpush1.xpose.msra.mxu0 0.0
        %836 = vmatprep.subr.mxu0 0.0
        %837 = vmatpush1.xpose.msra.mxu0 0.0
        %838 = vmatprep.subr.mxu0 0.0
        %839 = vmatpush1.xpose.msra.mxu0 0.0
        %840 = vmatprep.subr.mxu0 0.0
        %841 = vmatpush1.xpose.msra.mxu0 0.0
        %842 = vmatprep.subr.mxu0 0.0
        %843 = vmatpush1.xpose.msra.mxu0 0.0
        %844 = vmatprep.subr.mxu0 0.0
        %845 = vmatpush1.xpose.msra.mxu0 0.0
        %846 = vmatprep.subr.mxu0 0.0
        %847 = vmatpush1.xpose.msra.mxu0 0.0
        %848 = vmatprep.subr.mxu0 0.0
        %849 = vmatpush1.xpose.msra.mxu0 0.0
        %850 = vmatprep.subr.mxu0 0.0
        %851 = vmatpush1.xpose.msra.mxu0 0.0
        %852 = vmatprep.mubr.f32.mxu0 0.0
        %853 = vmatmul.mubr.f32.gmra.mrb[0].mxu0 %v783
        %v854 = vpop.f32.mrb[0].mxu0
        %v855 = vadd.f32 0.0, %v854
        %v856 = vpop.f32.mrb[0].mxu0
        %857 = vdwg.mxu0
        %vm858 = vcmask 64512
        %v859 = vsel %vm858, %v779, -inf
        %860 = vmax.xlane.f32.xlu0 %v859
        %v861 = vpop.xlane.xlu0 %860
        %v862 = vsel %vm858, %v855, -inf
        %863 = vmax.xlane.f32.xlu0 %v862
        %v864 = vpop.xlane.xlu0 %863
        %v865 = vsub.f32 %v779, %v861
        %v866 = vsub.f32 %v855, %v864
        %v867 = vmul.f32 %v865, 1.442695
        %v868 = vpow.pop %v867
        %v869 = vmul.f32 %v866, 1.442695
        %v870 = vpow.pop %v869
        %v871 = vsel %vm858, %v868, 0.0
        %872 = vadd.xlane.f32.xlu0 %v871
        %v873 = vpop.xlane.xlu0 %872
        %v874 = vsel %vm858, %v870, 0.0
        %875 = vadd.xlane.f32.xlu0 %v874
        %v876 = vpop.xlane.xlu0 %875
        %v877 = vrcp.pop %v873
        %v878 = vrcp.pop %v876
        %v879 = vmul.f32 %v868, %v877
        %v880 = vmul.f32 %v870, %v878
        %881 = vrot.lane.b32.xlu0 %v698, 96
        %v882 = vpop.permute.xlu0 %881
        %v885 = vsel %vm858, %v879, 0
        %887 = vmatprep.subr.mxu0 0.0
        %888 = vmatpush1.msra.mxu0 %v882
        %889 = vmatprep.subr.mxu0 0.0
        %890 = vmatpush1.msra.mxu0 0.0
        %891 = vmatprep.subr.mxu0 0.0
        %892 = vmatpush1.msra.mxu0 0.0
        %893 = vmatprep.subr.mxu0 0.0
        %894 = vmatpush1.msra.mxu0 0.0
        %895 = vmatprep.subr.mxu0 0.0
        %896 = vmatpush1.msra.mxu0 0.0
        %897 = vmatprep.subr.mxu0 0.0
        %898 = vmatpush1.msra.mxu0 0.0
        %899 = vmatprep.subr.mxu0 0.0
        %900 = vmatpush1.msra.mxu0 0.0
        %901 = vmatprep.subr.mxu0 0.0
        %902 = vmatpush1.msra.mxu0 0.0
        %903 = vmatprep.subr.mxu0 0.0
        %904 = vmatpush1.msra.mxu0 0.0
        %905 = vmatprep.subr.mxu0 0.0
        %906 = vmatpush1.msra.mxu0 0.0
        %907 = vmatprep.subr.mxu0 0.0
        %908 = vmatpush1.msra.mxu0 0.0
        %909 = vmatprep.subr.mxu0 0.0
        %910 = vmatpush1.msra.mxu0 0.0
        %911 = vmatprep.subr.mxu0 0.0
        %912 = vmatpush1.msra.mxu0 0.0
        %913 = vmatprep.subr.mxu0 0.0
        %914 = vmatpush1.msra.mxu0 0.0
        %915 = vmatprep.subr.mxu0 0.0
        %916 = vmatpush1.msra.mxu0 0.0
        %917 = vmatprep.subr.mxu0 0.0
        %918 = vmatpush1.msra.mxu0 0.0
        %919 = vmatprep.subr.mxu0 0.0
        %920 = vmatpush1.msra.mxu0 0.0
        %921 = vmatprep.subr.mxu0 0.0
        %922 = vmatpush1.msra.mxu0 0.0
        %923 = vmatprep.subr.mxu0 0.0
        %924 = vmatpush1.msra.mxu0 0.0
        %925 = vmatprep.subr.mxu0 0.0
        %926 = vmatpush1.msra.mxu0 0.0
        %927 = vmatprep.subr.mxu0 0.0
        %928 = vmatpush1.msra.mxu0 0.0
        %929 = vmatprep.subr.mxu0 0.0
        %930 = vmatpush1.msra.mxu0 0.0
        %931 = vmatprep.subr.mxu0 0.0
        %932 = vmatpush1.msra.mxu0 0.0
        %933 = vmatprep.subr.mxu0 0.0
        %934 = vmatpush1.msra.mxu0 0.0
        %935 = vmatprep.subr.mxu0 0.0
        %936 = vmatpush1.msra.mxu0 0.0
        %937 = vmatprep.subr.mxu0 0.0
        %938 = vmatpush1.msra.mxu0 0.0
        %939 = vmatprep.subr.mxu0 0.0
        %940 = vmatpush1.msra.mxu0 0.0
        %941 = vmatprep.subr.mxu0 0.0
        %942 = vmatpush1.msra.mxu0 0.0
        %943 = vmatprep.subr.mxu0 0.0
        %944 = vmatpush1.msra.mxu0 0.0
        %945 = vmatprep.subr.mxu0 0.0
        %946 = vmatpush1.msra.mxu0 0.0
        %947 = vmatprep.subr.mxu0 0.0
        %948 = vmatpush1.msra.mxu0 0.0
        %949 = vmatprep.subr.mxu0 0.0
        %950 = vmatpush1.msra.mxu0 0.0
        %951 = vmatprep.mubr.f32.mxu0 0.0
        %952 = vmatmul.mubr.f32.gmra.mrb[0].mxu0 %v885
        %v953 = vpop.f32.mrb[0].mxu0
        %v954 = vadd.f32 0.0, %v953
        %v955 = vpop.f32.mrb[0].mxu0
        %956 = vdwg.mxu0
        %957 = vrot.lane.b32.xlu0 %v703, 96
        %v958 = vpop.permute.xlu0 %957
        %v961 = vsel %vm858, %v880, 0
        %963 = vmatprep.subr.mxu0 0.0
        %964 = vmatpush1.msra.mxu0 %v958
        %965 = vmatprep.subr.mxu0 0.0
        %966 = vmatpush1.msra.mxu0 0.0
        %967 = vmatprep.subr.mxu0 0.0
        %968 = vmatpush1.msra.mxu0 0.0
        %969 = vmatprep.subr.mxu0 0.0
        %970 = vmatpush1.msra.mxu0 0.0
        %971 = vmatprep.subr.mxu0 0.0
        %972 = vmatpush1.msra.mxu0 0.0
        %973 = vmatprep.subr.mxu0 0.0
        %974 = vmatpush1.msra.mxu0 0.0
        %975 = vmatprep.subr.mxu0 0.0
        %976 = vmatpush1.msra.mxu0 0.0
        %977 = vmatprep.subr.mxu0 0.0
        %978 = vmatpush1.msra.mxu0 0.0
        %979 = vmatprep.subr.mxu0 0.0
        %980 = vmatpush1.msra.mxu0 0.0
        %981 = vmatprep.subr.mxu0 0.0
        %982 = vmatpush1.msra.mxu0 0.0
        %983 = vmatprep.subr.mxu0 0.0
        %984 = vmatpush1.msra.mxu0 0.0
        %985 = vmatprep.subr.mxu0 0.0
        %986 = vmatpush1.msra.mxu0 0.0
        %987 = vmatprep.subr.mxu0 0.0
        %988 = vmatpush1.msra.mxu0 0.0
        %989 = vmatprep.subr.mxu0 0.0
        %990 = vmatpush1.msra.mxu0 0.0
        %991 = vmatprep.subr.mxu0 0.0
        %992 = vmatpush1.msra.mxu0 0.0
        %993 = vmatprep.subr.mxu0 0.0
        %994 = vmatpush1.msra.mxu0 0.0
        %995 = vmatprep.subr.mxu0 0.0
        %996 = vmatpush1.msra.mxu0 0.0
        %997 = vmatprep.subr.mxu0 0.0
        %998 = vmatpush1.msra.mxu0 0.0
        %999 = vmatprep.subr.mxu0 0.0
        %1000 = vmatpush1.msra.mxu0 0.0
        %1001 = vmatprep.subr.mxu0 0.0
        %1002 = vmatpush1.msra.mxu0 0.0
        %1003 = vmatprep.subr.mxu0 0.0
        %1004 = vmatpush1.msra.mxu0 0.0
        %1005 = vmatprep.subr.mxu0 0.0
        %1006 = vmatpush1.msra.mxu0 0.0
        %1007 = vmatprep.subr.mxu0 0.0
        %1008 = vmatpush1.msra.mxu0 0.0
        %1009 = vmatprep.subr.mxu0 0.0
        %1010 = vmatpush1.msra.mxu0 0.0
        %1011 = vmatprep.subr.mxu0 0.0
        %1012 = vmatpush1.msra.mxu0 0.0
        %1013 = vmatprep.subr.mxu0 0.0
        %1014 = vmatpush1.msra.mxu0 0.0
        %1015 = vmatprep.subr.mxu0 0.0
        %1016 = vmatpush1.msra.mxu0 0.0
        %1017 = vmatprep.subr.mxu0 0.0
        %1018 = vmatpush1.msra.mxu0 0.0
        %1019 = vmatprep.subr.mxu0 0.0
        %1020 = vmatpush1.msra.mxu0 0.0
        %1021 = vmatprep.subr.mxu0 0.0
        %1022 = vmatpush1.msra.mxu0 0.0
        %1023 = vmatprep.subr.mxu0 0.0
        %1024 = vmatpush1.msra.mxu0 0.0
        %1025 = vmatprep.subr.mxu0 0.0
        %1026 = vmatpush1.msra.mxu0 0.0
        %1027 = vmatprep.mubr.f32.mxu0 0.0
        %1028 = vmatmul.mubr.f32.gmra.mrb[0].mxu0 %v961
        %v1029 = vpop.f32.mrb[0].mxu0
        %v1030 = vadd.f32 0.0, %v1029
        %v1031 = vpop.f32.mrb[0].mxu0
        %1032 = vdwg.mxu0
        %v1033 = vld [vmem:[#allocation10] sm:$0xff]
        %v1034 = vld [vmem:[#allocation10 + $0x8] sm:$0xff]
        %v1035 = vld [vmem:[#allocation10 + $0x10] sm:$0xff]
        %v1036 = vld [vmem:[#allocation10 + $0x18] sm:$0xff]
        %v1037 = vld [vmem:[%s7] sm:$0x1]
        %v1039 = vlaneseq
        %v1040 = vshrl.u32 %v1039, 7
        %v1041 = vsub.s32 0, %v1040
        %v1042 = vrot.slane %v1037, %v1041
        %v1045 = vsel %vm532, %v954, 0
        %v1048 = vsel %vm532, %v1030, 0
        %1050 = vmatprep.subr.mxu0 0.0
        %1051 = vmatpush1.msra.mxu0 %v1033
        %1052 = vmatprep.subr.mxu0 0.0
        %1053 = vmatpush1.msra.mxu0 %v1034
        %1054 = vmatprep.subr.mxu0 0.0
        %1055 = vmatpush1.msra.mxu0 %v1035
        %1056 = vmatprep.subr.mxu0 0.0
        %1057 = vmatpush1.msra.mxu0 %v1036
        %1058 = vmatprep.subr.mxu0 0.0
        %1059 = vmatpush1.msra.mxu0 0.0
        %1060 = vmatprep.subr.mxu0 0.0
        %1061 = vmatpush1.msra.mxu0 0.0
        %1062 = vmatprep.subr.mxu0 0.0
        %1063 = vmatpush1.msra.mxu0 0.0
        %1064 = vmatprep.subr.mxu0 0.0
        %1065 = vmatpush1.msra.mxu0 0.0
        %1066 = vmatprep.subr.mxu0 0.0
        %1067 = vmatpush1.msra.mxu0 0.0
        %1068 = vmatprep.subr.mxu0 0.0
        %1069 = vmatpush1.msra.mxu0 0.0
        %1070 = vmatprep.subr.mxu0 0.0
        %1071 = vmatpush1.msra.mxu0 0.0
        %1072 = vmatprep.subr.mxu0 0.0
        %1073 = vmatpush1.msra.mxu0 0.0
        %1074 = vmatprep.subr.mxu0 0.0
        %1075 = vmatpush1.msra.mxu0 0.0
        %1076 = vmatprep.subr.mxu0 0.0
        %1077 = vmatpush1.msra.mxu0 0.0
        %1078 = vmatprep.subr.mxu0 0.0
        %1079 = vmatpush1.msra.mxu0 0.0
        %1080 = vmatprep.subr.mxu0 0.0
        %1081 = vmatpush1.msra.mxu0 0.0
        %1082 = vmatprep.subr.mxu0 0.0
        %1083 = vmatpush1.msra.mxu0 0.0
        %1084 = vmatprep.subr.mxu0 0.0
        %1085 = vmatpush1.msra.mxu0 0.0
        %1086 = vmatprep.subr.mxu0 0.0
        %1087 = vmatpush1.msra.mxu0 0.0
        %1088 = vmatprep.subr.mxu0 0.0
        %1089 = vmatpush1.msra.mxu0 0.0
        %1090 = vmatprep.subr.mxu0 0.0
        %1091 = vmatpush1.msra.mxu0 0.0
        %1092 = vmatprep.subr.mxu0 0.0
        %1093 = vmatpush1.msra.mxu0 0.0
        %1094 = vmatprep.subr.mxu0 0.0
        %1095 = vmatpush1.msra.mxu0 0.0
        %1096 = vmatprep.subr.mxu0 0.0
        %1097 = vmatpush1.msra.mxu0 0.0
        %1098 = vmatprep.subr.mxu0 0.0
        %1099 = vmatpush1.msra.mxu0 0.0
        %1100 = vmatprep.subr.mxu0 0.0
        %1101 = vmatpush1.msra.mxu0 0.0
        %1102 = vmatprep.subr.mxu0 0.0
        %1103 = vmatpush1.msra.mxu0 0.0
        %1104 = vmatprep.subr.mxu0 0.0
        %1105 = vmatpush1.msra.mxu0 0.0
        %1106 = vmatprep.subr.mxu0 0.0
        %1107 = vmatpush1.msra.mxu0 0.0
        %1108 = vmatprep.subr.mxu0 0.0
        %1109 = vmatpush1.msra.mxu0 0.0
        %1110 = vmatprep.subr.mxu0 0.0
        %1111 = vmatpush1.msra.mxu0 0.0
        %1112 = vmatprep.subr.mxu0 0.0
        %1113 = vmatpush1.msra.mxu0 0.0
        %1114 = vmatprep.mubr.f32.mxu0 0.0
        %1115 = vmatmul.mubr.f32.gmra.mrb[0].mxu0 %v1045
        %v1116 = vpop.f32.mrb[0].mxu0
        %v1117 = vadd.f32 %v1042, %v1116
        %v1118 = vpop.f32.mrb[0].mxu0
        %1119 = vmatprep.mubr.f32.mxu0 0.0
        %1120 = vmatmul.mubr.f32.gmra.mrb[0].mxu0 %v1048
        %v1121 = vpop.f32.mrb[0].mxu0
        %v1122 = vadd.f32 %v1042, %v1121
        %v1123 = vpop.f32.mrb[0].mxu0
        %1124 = vdwg.mxu0
        %v1125 = vadd.f32 %v517, %v1117
        %v1126 = vadd.f32 %v518, %v1122
        %v1127 = vld [vmem:[#allocation11] sm:$0xff]
        %v1128 = vld [vmem:[#allocation11 + $0x8] sm:$0xff]
        %v1129 = vld [vmem:[#allocation11 + $0x10] sm:$0xff]
        %v1130 = vld [vmem:[#allocation11 + $0x18] sm:$0xff]
        %v1131 = vld [vmem:[%s9] sm:$0x1]
        %v1133 = vlaneseq
        %v1134 = vshrl.u32 %v1133, 7
        %v1135 = vsub.s32 0, %v1134
        %v1136 = vrot.slane %v1131, %v1135
        %v1139 = vsel %vm532, %v1125, 0
        %v1142 = vsel %vm532, %v1126, 0
        %1144 = vmatprep.subr.mxu0 0.0
        %1145 = vmatpush1.msra.mxu0 %v1127
        %1146 = vmatprep.subr.mxu0 0.0
        %1147 = vmatpush1.msra.mxu0 %v1128
        %1148 = vmatprep.subr.mxu0 0.0
        %1149 = vmatpush1.msra.mxu0 %v1129
        %1150 = vmatprep.subr.mxu0 0.0
        %1151 = vmatpush1.msra.mxu0 %v1130
        %1152 = vmatprep.subr.mxu0 0.0
        %1153 = vmatpush1.msra.mxu0 0.0
        %1154 = vmatprep.subr.mxu0 0.0
        %1155 = vmatpush1.msra.mxu0 0.0
        %1156 = vmatprep.subr.mxu0 0.0
        %1157 = vmatpush1.msra.mxu0 0.0
        %1158 = vmatprep.subr.mxu0 0.0
        %1159 = vmatpush1.msra.mxu0 0.0
        %1160 = vmatprep.subr.mxu0 0.0
        %1161 = vmatpush1.msra.mxu0 0.0
        %1162 = vmatprep.subr.mxu0 0.0
        %1163 = vmatpush1.msra.mxu0 0.0
        %1164 = vmatprep.subr.mxu0 0.0
        %1165 = vmatpush1.msra.mxu0 0.0
        %1166 = vmatprep.subr.mxu0 0.0
        %1167 = vmatpush1.msra.mxu0 0.0
        %1168 = vmatprep.subr.mxu0 0.0
        %1169 = vmatpush1.msra.mxu0 0.0
        %1170 = vmatprep.subr.mxu0 0.0
        %1171 = vmatpush1.msra.mxu0 0.0
        %1172 = vmatprep.subr.mxu0 0.0
        %1173 = vmatpush1.msra.mxu0 0.0
        %1174 = vmatprep.subr.mxu0 0.0
        %1175 = vmatpush1.msra.mxu0 0.0
        %1176 = vmatprep.subr.mxu0 0.0
        %1177 = vmatpush1.msra.mxu0 0.0
        %1178 = vmatprep.subr.mxu0 0.0
        %1179 = vmatpush1.msra.mxu0 0.0
        %1180 = vmatprep.subr.mxu0 0.0
        %1181 = vmatpush1.msra.mxu0 0.0
        %1182 = vmatprep.subr.mxu0 0.0
        %1183 = vmatpush1.msra.mxu0 0.0
        %1184 = vmatprep.subr.mxu0 0.0
        %1185 = vmatpush1.msra.mxu0 0.0
        %1186 = vmatprep.subr.mxu0 0.0
        %1187 = vmatpush1.msra.mxu0 0.0
        %1188 = vmatprep.subr.mxu0 0.0
        %1189 = vmatpush1.msra.mxu0 0.0
        %1190 = vmatprep.subr.mxu0 0.0
        %1191 = vmatpush1.msra.mxu0 0.0
        %1192 = vmatprep.subr.mxu0 0.0
        %1193 = vmatpush1.msra.mxu0 0.0
        %1194 = vmatprep.subr.mxu0 0.0
        %1195 = vmatpush1.msra.mxu0 0.0
        %1196 = vmatprep.subr.mxu0 0.0
        %1197 = vmatpush1.msra.mxu0 0.0
        %1198 = vmatprep.subr.mxu0 0.0
        %1199 = vmatpush1.msra.mxu0 0.0
        %1200 = vmatprep.subr.mxu0 0.0
        %1201 = vmatpush1.msra.mxu0 0.0
        %1202 = vmatprep.subr.mxu0 0.0
        %1203 = vmatpush1.msra.mxu0 0.0
        %1204 = vmatprep.subr.mxu0 0.0
        %1205 = vmatpush1.msra.mxu0 0.0
        %1206 = vmatprep.subr.mxu0 0.0
        %1207 = vmatpush1.msra.mxu0 0.0
        %1208 = vmatprep.mubr.f32.mxu0 0.0
        %1209 = vmatmul.mubr.f32.gmra.mrb[0].mxu0 %v1139
        %v1210 = vpop.f32.mrb[0].mxu0
        %v1211 = vadd.f32 %v1136, %v1210
        %v1212 = vpop.f32.mrb[0].mxu0
        %1213 = vmatprep.mubr.f32.mxu0 0.0
        %1214 = vmatmul.mubr.f32.gmra.mrb[0].mxu0 %v1142
        %v1215 = vpop.f32.mrb[0].mxu0
        %v1216 = vadd.f32 %v1136, %v1215
        %v1217 = vpop.f32.mrb[0].mxu0
        %1218 = vdwg.mxu0
        %1219 = vst [vmem:[%s513] sm:$0xff] %v1211
        %1220 = vst [vmem:[%s513 + $0x8] sm:$0xff] %v1216
        %v1221 = vrot.slane %v1126, 7
        %vm1222 = vcmask 1041409
        %v1223 = vsel %vm1222, %v1221, %v1125
        %vm1225 = vcmask 254976
        %1226 = vst.msk [vmem:[%s506] sm:$0x3] %vm1225, %v1223
        %s1227 = sand.u32 %s265, 1
        %s1228 = scalar_lea.sflag [#allocation4], %s1227
        %s1229 = sand.u32 %s265, 1
        %s1230 = smul.addr %s1229, 2
        %s1231 = scalar_lea.vmem [#allocation13], %s1230
        %s1232 = sand.u32 %s291, 1
        %s1233 = scalar_lea.sflag [#allocation15], %s1232
        %s1234 = sand.u32 %s291, 1
        %s1235 = smul.addr %s1234, 16
        %s1236 = scalar_lea.vmem [#allocation14], %s1235
        // Predicated region
        $region85: #{tpu_custom_call.1} parent=59 // pred_check
          %p1237 = pneg %p275
        $region86: #{tpu_custom_call.1} parent=59 // pred_check_branch
          %1239 = sbr.rel (%p1237) target = $region88
        $region87: #{tpu_custom_call.1} parent=59 // pred_region
          %s1241 = ssub.s32 32, 32
          %1242 = vsyncadd %s1228, %s1241
          %s1243 = smul.addr %s37, 32
          %s1244 = scalar_lea.hbm %s10, %s1243
          %s1246 = sshll.u32 %s1231, 4
          %s1247 = int_to_ptr.vmem [resolvable:$true] %s1246
          %1249 = dma.vmem_to_hbm [thread:$0]  %s1247, 32, %s1244, %s1228
        $region88: #{tpu_custom_call.1} parent=59 // pred_fallthru
          _
        // Predicated region
        $region89: #{tpu_custom_call.1} parent=59 // pred_check
          %p1250 = pneg %p301
        $region90: #{tpu_custom_call.1} parent=59 // pred_check_branch
          %1252 = sbr.rel (%p1250) target = $region92
        $region91: #{tpu_custom_call.1} parent=59 // pred_region
          %s1253 = smul.u32 2, %s37
          %s1255 = ssub.s32 256, 256
          %1256 = vsyncadd %s1233, %s1255
          %s1257 = smul.addr %s1253, 128
          %s1258 = scalar_lea.hbm %s11, %s1257
          %s1259 = sshll.u32 %s1236, 4
          %s1260 = int_to_ptr.vmem [resolvable:$true] %s1259
          %1265 = dma.vmem_to_hbm [thread:$0]  %s1260, 256, %s1258, %s1233, 128, 128, 8
        $region92: #{tpu_custom_call.1} parent=59 // pred_fallthru
          _
      $region60: #{tpu_custom_call.1} parent=5 // pred_fallthru
        _
      %p1266 = scmp.le.s32.totalorder 2, %s32
      // Predicated region
      $region93: #{tpu_custom_call.1} parent=5 // pred_check
        %p1267 = pneg %p1266
      $region94: #{tpu_custom_call.1} parent=5 // pred_check_branch
        %1269 = sbr.rel (%p1267) target = $region96
      $region95: #{tpu_custom_call.1} parent=5 // pred_region
        %s1270 = ssub.s32 %s32, 2
        // Predicated region
        $region97: #{tpu_custom_call.1} parent=95 // pred_check
          %p1271 = pneg %p281
        $region98: #{tpu_custom_call.1} parent=95 // pred_check_branch
          %1273 = sbr.rel (%p1271) target = $region100
        $region99: #{tpu_custom_call.1} parent=95 // pred_region
          %s1274 = sand.u32 %s266, 1
          %s1275 = scalar_lea.sflag [#allocation4], %s1274
          %s1276 = sand.u32 %s266, 1
          %s1277 = smul.addr %s1276, 2
          %s1278 = scalar_lea.vmem [#allocation13], %s1277
          %1279 = dma.done %s1275, 32
        $region100: #{tpu_custom_call.1} parent=95 // pred_fallthru
          _
        // Predicated region
        $region101: #{tpu_custom_call.1} parent=95 // pred_check
          %p1280 = pneg %p307
        $region102: #{tpu_custom_call.1} parent=95 // pred_check_branch
          %1282 = sbr.rel (%p1280) target = $region104
        $region103: #{tpu_custom_call.1} parent=95 // pred_region
          %s1283 = sand.u32 %s292, 1
          %s1284 = scalar_lea.sflag [#allocation15], %s1283
          %s1285 = sand.u32 %s292, 1
          %s1286 = smul.addr %s1285, 16
          %s1287 = scalar_lea.vmem [#allocation14], %s1286
          %1288 = dma.done %s1284, 256
        $region104: #{tpu_custom_call.1} parent=95 // pred_fallthru
          _
      $region96: #{tpu_custom_call.1} parent=5 // pred_fallthru
        _
    $region6: #{tpu_custom_call.1} parent=1 // loop_footer
      %s36 = sadd.s32 1, %s32
    $region7: #{tpu_custom_call.1} parent=1 // loop_footer_branch
      %31 = sbr.rel target = $region3
    $region8: #{tpu_custom_call.1} parent=1 // loop_exit
      _
    %1289 = vsyncpa [#allocation3], 1
    %s1290 = scalar_lea.sflag [#allocation3], 1
    %1291 = vsyncpa %s1290, 1
    %1292 = vsyncpa [#allocation6], 1
    %s1293 = scalar_lea.sflag [#allocation6], 1
    %1294 = vsyncpa %s1293, 1
    %1295 = vsyncpa [#allocation9], 1
    %1296 = vsyncpa [#allocation12], 1
    %1297 = vsyncpa [#allocation4], 1
    %s1298 = scalar_lea.sflag [#allocation4], 1
    %1299 = vsyncpa %s1298, 1
    %1300 = vsyncpa [#allocation15], 1
    %s1301 = scalar_lea.sflag [#allocation15], 1
    %1302 = vsyncpa %s1301, 1

</llo_original>
